<compile_context>
chip_gen: v7x
topology: tpu7x:2x2x1
jax: 0.10.0
libtpu: 0.0.40
codegen_flags: <defaults>
</compile_context>

<pallas_src>
import functools

import jax
import jax.numpy as jnp
from jax.experimental import pallas as pl
from jax.experimental.pallas import tpu as pltpu

LANE = 128


def _round_up(x, m):
    return ((x + m - 1) // m) * m


# ----------------------------------------------------------------------------
# Fused multi-step GRUCell + Policy kernel (one row-tile per grid step).
#
# PyTorch nn.GRUCell semantics (gate order r, z, n):
#   gi = x @ W_ih^T + b_ih        gh = h @ W_hh^T + b_hh
#   r = sigmoid(gi_r + gh_r)
#   z = sigmoid(gi_z + gh_z)
#   n = tanh(gi_n + r * gh_n)
#   h' = (1 - z) * n + z * h
# Policy (assumed linear head H -> 1):
#   logits = h' @ W_p + b_p
# ----------------------------------------------------------------------------
def _anycq_recurrence_kernel(h0_ref, wf_ref, bf_ref, whn_ref, bhn_ref, wp_ref,
                             h_out_ref, logits_ref, *, steps, hp):
    Hp = hp
    # PyTorch: h_val = self.h_val_init.tile(data.num_val, 1)
    # Broadcast the (1, Hp) learned init row to the whole row tile (hoisted, once).
    h = jnp.broadcast_to(h0_ref[...], h_out_ref.shape).astype(jnp.float32)

    wf = wf_ref[...]       # (2Hp, 3Hp) fused [x | h] -> [r | z | i_n] gate weights
    bf = bf_ref[...]       # (1, 3Hp)   biases (r,z pre-summed; n = b_ih_n only)
    whn = whn_ref[...]     # (Hp, Hp)   W_hh^T for the n gate (kept separate: r * gh_n)
    bhn = bhn_ref[...]     # (1, Hp)    b_hh_n

    def step_fn(_, h):
        # TODO(synk): Val2Cst_Layer / Cst2Val_Layer / Val2Val_Layer (graph message
        # passing over the undocumented `data` object) are not defined in the given
        # source; z_val is passed through as h_val.
        z = h
        xh = jnp.concatenate([z, h], axis=-1)                                  # (TN, 2Hp)
        g = jnp.dot(xh, wf, preferred_element_type=jnp.float32) + bf           # (TN, 3Hp)
        gh_n = jnp.dot(h, whn, preferred_element_type=jnp.float32) + bhn       # (TN, Hp)
        # Lane-aligned (128-multiple) gate slices -> zero-cost vreg views.
        r = jax.nn.sigmoid(g[:, 0:Hp])
        zg = jax.nn.sigmoid(g[:, Hp:2 * Hp])
        n = jnp.tanh(g[:, 2 * Hp:3 * Hp] + r * gh_n)
        return (1.0 - zg) * n + zg * h

    h = jax.lax.fori_loop(0, steps, step_fn, h, unroll=True)

    h_out_ref[...] = h.astype(h_out_ref.dtype)
    # Policy head, lane-dense: W_p padded to (Hp, 128) (only column 0 real) so both
    # the MXU result and the store are full-lane; column 0 is sliced in the wrapper.
    logits_ref[...] = jnp.dot(
        h, wp_ref[...], preferred_element_type=jnp.float32).astype(logits_ref.dtype)


# ----------------------------------------------------------------------------
# Host-side weight packing: pad to 128-lane multiples, fuse gates, pre-sum biases.
# ----------------------------------------------------------------------------
def pack_params(params):
    H = params["h_val_init"].shape[1]
    Hp = _round_up(H, LANE)
    w_ih, w_hh = params["w_ih_t"], params["w_hh_t"]      # (H, 3H), column blocks [r|z|n]
    b_ih, b_hh = params["b_ih"], params["b_hh"]          # (1, 3H)

    wf = jnp.zeros((2 * Hp, 3 * Hp), jnp.float32)
    bf = jnp.zeros((1, 3 * Hp), jnp.float32)
    # r gate -> columns [0, Hp)
    wf = wf.at[0:H, 0:H].set(w_ih[:, 0:H])
    wf = wf.at[Hp:Hp + H, 0:H].set(w_hh[:, 0:H])
    bf = bf.at[0, 0:H].set(b_ih[0, 0:H] + b_hh[0, 0:H])
    # z gate -> columns [Hp, 2Hp)
    wf = wf.at[0:H, Hp:Hp + H].set(w_ih[:, H:2 * H])
    wf = wf.at[Hp:Hp + H, Hp:Hp + H].set(w_hh[:, H:2 * H])
    bf = bf.at[0, Hp:Hp + H].set(b_ih[0, H:2 * H] + b_hh[0, H:2 * H])
    # n gate, input half only -> columns [2Hp, 3Hp)
    wf = wf.at[0:H, 2 * Hp:2 * Hp + H].set(w_ih[:, 2 * H:3 * H])
    bf = bf.at[0, 2 * Hp:2 * Hp + H].set(b_ih[0, 2 * H:3 * H])
    # n gate, hidden half kept separate (needs r * gh_n)
    whn = jnp.zeros((Hp, Hp), jnp.float32).at[0:H, 0:H].set(w_hh[:, 2 * H:3 * H])
    bhn = jnp.zeros((1, Hp), jnp.float32).at[0, 0:H].set(b_hh[0, 2 * H:3 * H])
    # policy head padded to a full 128-lane slab
    wp = jnp.zeros((Hp, LANE), jnp.float32).at[0:H, 0:1].set(params["w_p"])
    # padded initial hidden row (padding lanes stay exactly zero through the recurrence)
    h0 = jnp.zeros((1, Hp), jnp.float32).at[0, 0:H].set(params["h_val_init"][0])
    return {"h0": h0, "wf": wf, "bf": bf, "whn": whn, "bhn": bhn, "wp": wp,
            "b_p": params["b_p"], "H": H, "Hp": Hp}


# ----------------------------------------------------------------------------
# ANYCQ forward: whole solver recurrence inside one pallas_call.
# ----------------------------------------------------------------------------
def anycq_forward(params, num_val, steps, *, tile_n=256):
    packed = pack_params(params)
    H, Hp = packed["H"], packed["Hp"]
    N = num_val
    # Ragged N: shrink the tile for tiny problems, pad N up to a tile multiple.
    tn = min(tile_n, _round_up(N, 8))
    n_pad = _round_up(N, tn)

    kernel = functools.partial(_anycq_recurrence_kernel, steps=steps, hp=Hp)
    full = lambda shape: pl.BlockSpec(shape, lambda i: (0, 0))
    row = lambda w: pl.BlockSpec((tn, w), lambda i: (i, 0))

    h_pad, logits_pad = pl.pallas_call(
        kernel,
        out_shape=(
            jax.ShapeDtypeStruct((n_pad, Hp), jnp.float32),
            jax.ShapeDtypeStruct((n_pad, LANE), jnp.float32),
        ),
        grid_spec=pltpu.PrefetchScalarGridSpec(
            num_scalar_prefetch=0,
            grid=(n_pad // tn,),
            in_specs=[
                full((1, Hp)),            # h_val_init row (lane-padded)
                full((2 * Hp, 3 * Hp)),   # fused gate weights
                full((1, 3 * Hp)),        # fused gate biases
                full((Hp, Hp)),           # W_hh^T, n gate
                full((1, Hp)),            # b_hh, n gate
                full((Hp, LANE)),         # policy weights (lane-padded)
            ],
            out_specs=[row(Hp), row(LANE)],
        ),
        compiler_params=pltpu.CompilerParams(
            dimension_semantics=("parallel",)),
    )(packed["h0"], packed["wf"], packed["bf"],
      packed["whn"], packed["bhn"], packed["wp"])

    h_val = h_pad[:N, :H]
    logits = logits_pad[:N, 0:1] + packed["b_p"]   # + b_p folded on host (scalar)
    # TODO(synk): data.hard_assign_sample / constraint_min_sat (assignment sampling
    # and CQ scoring) are methods of an undocumented data object; omitted.
    return h_val, logits


# ----------------------------------------------------------------------------
# Pure-JAX reference (identical semantics, unpadded) for a correctness check.
# ----------------------------------------------------------------------------
def anycq_reference(params, num_val, steps):
    H = params["h_val_init"].shape[1]
    h = jnp.tile(params["h_val_init"], (num_val, 1))
    logits = None
    for _ in range(steps):
        z = h
        gi = z @ params["w_ih_t"] + params["b_ih"]
        gh = h @ params["w_hh_t"] + params["b_hh"]
        r = jax.nn.sigmoid(gi[:, 0:H] + gh[:, 0:H])
        zz = jax.nn.sigmoid(gi[:, H:2 * H] + gh[:, H:2 * H])
        n = jnp.tanh(gi[:, 2 * H:3 * H] + r * gh[:, 2 * H:3 * H])
        h = (1.0 - zz) * n + zz * h
        logits = h @ params["w_p"] + params["b_p"]
    return h, logits


# ----------------------------------------------------------------------------
# Parameter init (deterministic, mirrors module __init__ shapes)
# ----------------------------------------------------------------------------
def init_params(key, hidden_dim):
    H = hidden_dim
    ks = jax.random.split(key, 7)
    return {
        # self.h_val_init : Parameter (1, hidden_dim), normal(0, 1)
        "h_val_init": jax.random.normal(ks[0], (1, H), dtype=jnp.float32),
        # GRUCell(H, H) weights, stored pre-transposed: (H, 3H) column blocks [r|z|n]
        "w_ih_t": 0.1 * jax.random.normal(ks[1], (H, 3 * H), dtype=jnp.float32),
        "w_hh_t": 0.1 * jax.random.normal(ks[2], (H, 3 * H), dtype=jnp.float32),
        "b_ih": 0.1 * jax.random.normal(ks[3], (1, 3 * H), dtype=jnp.float32),
        "b_hh": 0.1 * jax.random.normal(ks[4], (1, 3 * H), dtype=jnp.float32),
        # Policy head (assumed linear H -> 1)
        "w_p": 0.1 * jax.random.normal(ks[5], (H, 1), dtype=jnp.float32),
        "b_p": 0.1 * jax.random.normal(ks[6], (1, 1), dtype=jnp.float32),
    }


if __name__ == "__main__":
    hidden_dim = 32     # config['hidden_dim']
    num_val = 16        # data.num_val
    steps = 4

    key = jax.random.PRNGKey(0)
    params = init_params(key, hidden_dim)

    h_val, logits = anycq_forward(params, num_val, steps)
    jax.block_until_ready((h_val, logits))

    assert h_val.shape == (num_val, hidden_dim)
    assert logits.shape == (num_val, 1)
    assert bool(jnp.all(jnp.isfinite(h_val))) and bool(jnp.all(jnp.isfinite(logits)))

    h_ref, logits_ref = anycq_reference(params, num_val, steps)
    assert bool(jnp.allclose(h_val, h_ref, rtol=1e-4, atol=1e-4)), "h_val mismatch"
    assert bool(jnp.allclose(logits, logits_ref, rtol=1e-4, atol=1e-4)), "logits mismatch"

    print("KERNEL_OK")
</pallas_src>

<mosaic_0001>
module attributes {stable_mosaic.version = 11 : i64} {
  func.func @_anycq_recurrence_kernel(%arg0: i32, %arg1: memref<1x128xf32, #tpu.memory_space<vmem>>, %arg2: memref<256x384xf32, #tpu.memory_space<vmem>>, %arg3: memref<1x384xf32, #tpu.memory_space<vmem>>, %arg4: memref<128x128xf32, #tpu.memory_space<vmem>>, %arg5: memref<1x128xf32, #tpu.memory_space<vmem>>, %arg6: memref<128x128xf32, #tpu.memory_space<vmem>>, %arg7: memref<16x128xf32, #tpu.memory_space<vmem>>, %arg8: memref<16x128xf32, #tpu.memory_space<vmem>>) attributes {dimension_semantics = [#tpu.dimension_semantics<parallel>], iteration_bounds = array<i64: 1>, scalar_prefetch = 0 : i64, scratch_operands = 0 : i64, tpu.core_type = #tpu.core_type<tc>, window_params = [{pipeline_mode = #tpu.pipeline_mode<synchronous>, transform_indices = @transform_0, window_bounds = array<i64: 1, 128>}, {pipeline_mode = #tpu.pipeline_mode<synchronous>, transform_indices = @transform_1, window_bounds = array<i64: 256, 384>}, {pipeline_mode = #tpu.pipeline_mode<synchronous>, transform_indices = @transform_2, window_bounds = array<i64: 1, 384>}, {pipeline_mode = #tpu.pipeline_mode<synchronous>, transform_indices = @transform_3, window_bounds = array<i64: 128, 128>}, {pipeline_mode = #tpu.pipeline_mode<synchronous>, transform_indices = @transform_4, window_bounds = array<i64: 1, 128>}, {pipeline_mode = #tpu.pipeline_mode<synchronous>, transform_indices = @transform_5, window_bounds = array<i64: 128, 128>}, {transform_indices = @transform_6, window_bounds = array<i64: 16, 128>}, {transform_indices = @transform_7, window_bounds = array<i64: 16, 128>}]} {
    %c0 = arith.constant 0 : index
    %c0_0 = arith.constant 0 : index
    %0 = vector.load %arg1[%c0, %c0_0] : memref<1x128xf32, #tpu.memory_space<vmem>>, vector<1x128xf32>
    %1 = vector.shape_cast %0 : vector<1x128xf32> to vector<1x128xf32>
    %2 = vector.broadcast %1 : vector<1x128xf32> to vector<16x128xf32>
    %c0_1 = arith.constant 0 : index
    %c0_2 = arith.constant 0 : index
    %3 = vector.load %arg2[%c0_1, %c0_2] : memref<256x384xf32, #tpu.memory_space<vmem>>, vector<256x384xf32>
    %c0_3 = arith.constant 0 : index
    %c0_4 = arith.constant 0 : index
    %4 = vector.load %arg3[%c0_3, %c0_4] : memref<1x384xf32, #tpu.memory_space<vmem>>, vector<1x384xf32>
    %c0_5 = arith.constant 0 : index
    %c0_6 = arith.constant 0 : index
    %5 = vector.load %arg4[%c0_5, %c0_6] : memref<128x128xf32, #tpu.memory_space<vmem>>, vector<128x128xf32>
    %c0_7 = arith.constant 0 : index
    %c0_8 = arith.constant 0 : index
    %6 = vector.load %arg5[%c0_7, %c0_8] : memref<1x128xf32, #tpu.memory_space<vmem>>, vector<1x128xf32>
    %c0_i32 = arith.constant 0 : i32
    %7 = tpu.concatenate %2, %2 in 1 : vector<16x128xf32>, vector<16x128xf32> -> vector<16x256xf32>
    %cst = arith.constant dense<0.000000e+00> : vector<16x384xf32>
    %8 = tpu.matmul %7, %3, %cst {dimension_numbers = #tpu.dot_dimension_numbers<[1], [0], [0], [1], [0, 0, 1, 1], [], []>} : vector<16x256xf32>, vector<256x384xf32>, vector<16x384xf32> -> vector<16x384xf32>
    %9 = vector.broadcast %4 : vector<1x384xf32> to vector<16x384xf32>
    %10 = arith.addf %8, %9 : vector<16x384xf32>
    %cst_9 = arith.constant dense<0.000000e+00> : vector<16x128xf32>
    %11 = tpu.matmul %2, %5, %cst_9 {dimension_numbers = #tpu.dot_dimension_numbers<[1], [0], [0], [1], [0, 0, 1, 1], [], []>} : vector<16x128xf32>, vector<128x128xf32>, vector<16x128xf32> -> vector<16x128xf32>
    %12 = vector.broadcast %6 : vector<1x128xf32> to vector<16x128xf32>
    %13 = arith.addf %11, %12 : vector<16x128xf32>
    %14 = vector.extract_strided_slice %10 {offsets = [0, 0], sizes = [16, 128], strides = [1, 1]} : vector<16x384xf32> to vector<16x128xf32>
    %15 = arith.negf %14 : vector<16x128xf32>
    %16 = math.exp %15 : vector<16x128xf32>
    %cst_10 = arith.constant 1.000000e+00 : f32
    %17 = vector.broadcast %cst_10 : f32 to vector<16x128xf32>
    %18 = arith.addf %17, %16 : vector<16x128xf32>
    %19 = arith.divf %17, %18 : vector<16x128xf32>
    %20 = vector.extract_strided_slice %10 {offsets = [0, 128], sizes = [16, 128], strides = [1, 1]} : vector<16x384xf32> to vector<16x128xf32>
    %21 = arith.negf %20 : vector<16x128xf32>
    %22 = math.exp %21 : vector<16x128xf32>
    %cst_11 = arith.constant 1.000000e+00 : f32
    %23 = vector.broadcast %cst_11 : f32 to vector<16x128xf32>
    %24 = arith.addf %23, %22 : vector<16x128xf32>
    %25 = arith.divf %23, %24 : vector<16x128xf32>
    %26 = vector.extract_strided_slice %10 {offsets = [0, 256], sizes = [16, 128], strides = [1, 1]} : vector<16x384xf32> to vector<16x128xf32>
    %27 = arith.mulf %19, %13 : vector<16x128xf32>
    %28 = arith.addf %26, %27 : vector<16x128xf32>
    %29 = math.tanh %28 : vector<16x128xf32>
    %cst_12 = arith.constant 1.000000e+00 : f32
    %30 = vector.broadcast %cst_12 : f32 to vector<16x128xf32>
    %31 = arith.subf %30, %25 : vector<16x128xf32>
    %32 = arith.mulf %31, %29 : vector<16x128xf32>
    %33 = arith.mulf %25, %2 : vector<16x128xf32>
    %34 = arith.addf %32, %33 : vector<16x128xf32>
    %c1_i32 = arith.constant 1 : i32
    %35 = tpu.concatenate %34, %34 in 1 : vector<16x128xf32>, vector<16x128xf32> -> vector<16x256xf32>
    %cst_13 = arith.constant dense<0.000000e+00> : vector<16x384xf32>
    %36 = tpu.matmul %35, %3, %cst_13 {dimension_numbers = #tpu.dot_dimension_numbers<[1], [0], [0], [1], [0, 0, 1, 1], [], []>} : vector<16x256xf32>, vector<256x384xf32>, vector<16x384xf32> -> vector<16x384xf32>
    %37 = vector.broadcast %4 : vector<1x384xf32> to vector<16x384xf32>
    %38 = arith.addf %36, %37 : vector<16x384xf32>
    %cst_14 = arith.constant dense<0.000000e+00> : vector<16x128xf32>
    %39 = tpu.matmul %34, %5, %cst_14 {dimension_numbers = #tpu.dot_dimension_numbers<[1], [0], [0], [1], [0, 0, 1, 1], [], []>} : vector<16x128xf32>, vector<128x128xf32>, vector<16x128xf32> -> vector<16x128xf32>
    %40 = vector.broadcast %6 : vector<1x128xf32> to vector<16x128xf32>
    %41 = arith.addf %39, %40 : vector<16x128xf32>
    %42 = vector.extract_strided_slice %38 {offsets = [0, 0], sizes = [16, 128], strides = [1, 1]} : vector<16x384xf32> to vector<16x128xf32>
    %43 = arith.negf %42 : vector<16x128xf32>
    %44 = math.exp %43 : vector<16x128xf32>
    %cst_15 = arith.constant 1.000000e+00 : f32
    %45 = vector.broadcast %cst_15 : f32 to vector<16x128xf32>
    %46 = arith.addf %45, %44 : vector<16x128xf32>
    %47 = arith.divf %45, %46 : vector<16x128xf32>
    %48 = vector.extract_strided_slice %38 {offsets = [0, 128], sizes = [16, 128], strides = [1, 1]} : vector<16x384xf32> to vector<16x128xf32>
    %49 = arith.negf %48 : vector<16x128xf32>
    %50 = math.exp %49 : vector<16x128xf32>
    %cst_16 = arith.constant 1.000000e+00 : f32
    %51 = vector.broadcast %cst_16 : f32 to vector<16x128xf32>
    %52 = arith.addf %51, %50 : vector<16x128xf32>
    %53 = arith.divf %51, %52 : vector<16x128xf32>
    %54 = vector.extract_strided_slice %38 {offsets = [0, 256], sizes = [16, 128], strides = [1, 1]} : vector<16x384xf32> to vector<16x128xf32>
    %55 = arith.mulf %47, %41 : vector<16x128xf32>
    %56 = arith.addf %54, %55 : vector<16x128xf32>
    %57 = math.tanh %56 : vector<16x128xf32>
    %cst_17 = arith.constant 1.000000e+00 : f32
    %58 = vector.broadcast %cst_17 : f32 to vector<16x128xf32>
    %59 = arith.subf %58, %53 : vector<16x128xf32>
    %60 = arith.mulf %59, %57 : vector<16x128xf32>
    %61 = arith.mulf %53, %34 : vector<16x128xf32>
    %62 = arith.addf %60, %61 : vector<16x128xf32>
    %c2_i32 = arith.constant 2 : i32
    %63 = tpu.concatenate %62, %62 in 1 : vector<16x128xf32>, vector<16x128xf32> -> vector<16x256xf32>
    %cst_18 = arith.constant dense<0.000000e+00> : vector<16x384xf32>
    %64 = tpu.matmul %63, %3, %cst_18 {dimension_numbers = #tpu.dot_dimension_numbers<[1], [0], [0], [1], [0, 0, 1, 1], [], []>} : vector<16x256xf32>, vector<256x384xf32>, vector<16x384xf32> -> vector<16x384xf32>
    %65 = vector.broadcast %4 : vector<1x384xf32> to vector<16x384xf32>
    %66 = arith.addf %64, %65 : vector<16x384xf32>
    %cst_19 = arith.constant dense<0.000000e+00> : vector<16x128xf32>
    %67 = tpu.matmul %62, %5, %cst_19 {dimension_numbers = #tpu.dot_dimension_numbers<[1], [0], [0], [1], [0, 0, 1, 1], [], []>} : vector<16x128xf32>, vector<128x128xf32>, vector<16x128xf32> -> vector<16x128xf32>
    %68 = vector.broadcast %6 : vector<1x128xf32> to vector<16x128xf32>
    %69 = arith.addf %67, %68 : vector<16x128xf32>
    %70 = vector.extract_strided_slice %66 {offsets = [0, 0], sizes = [16, 128], strides = [1, 1]} : vector<16x384xf32> to vector<16x128xf32>
    %71 = arith.negf %70 : vector<16x128xf32>
    %72 = math.exp %71 : vector<16x128xf32>
    %cst_20 = arith.constant 1.000000e+00 : f32
    %73 = vector.broadcast %cst_20 : f32 to vector<16x128xf32>
    %74 = arith.addf %73, %72 : vector<16x128xf32>
    %75 = arith.divf %73, %74 : vector<16x128xf32>
    %76 = vector.extract_strided_slice %66 {offsets = [0, 128], sizes = [16, 128], strides = [1, 1]} : vector<16x384xf32> to vector<16x128xf32>
    %77 = arith.negf %76 : vector<16x128xf32>
    %78 = math.exp %77 : vector<16x128xf32>
    %cst_21 = arith.constant 1.000000e+00 : f32
    %79 = vector.broadcast %cst_21 : f32 to vector<16x128xf32>
    %80 = arith.addf %79, %78 : vector<16x128xf32>
    %81 = arith.divf %79, %80 : vector<16x128xf32>
    %82 = vector.extract_strided_slice %66 {offsets = [0, 256], sizes = [16, 128], strides = [1, 1]} : vector<16x384xf32> to vector<16x128xf32>
    %83 = arith.mulf %75, %69 : vector<16x128xf32>
    %84 = arith.addf %82, %83 : vector<16x128xf32>
    %85 = math.tanh %84 : vector<16x128xf32>
    %cst_22 = arith.constant 1.000000e+00 : f32
    %86 = vector.broadcast %cst_22 : f32 to vector<16x128xf32>
    %87 = arith.subf %86, %81 : vector<16x128xf32>
    %88 = arith.mulf %87, %85 : vector<16x128xf32>
    %89 = arith.mulf %81, %62 : vector<16x128xf32>
    %90 = arith.addf %88, %89 : vector<16x128xf32>
    %c3_i32 = arith.constant 3 : i32
    %91 = tpu.concatenate %90, %90 in 1 : vector<16x128xf32>, vector<16x128xf32> -> vector<16x256xf32>
    %cst_23 = arith.constant dense<0.000000e+00> : vector<16x384xf32>
    %92 = tpu.matmul %91, %3, %cst_23 {dimension_numbers = #tpu.dot_dimension_numbers<[1], [0], [0], [1], [0, 0, 1, 1], [], []>} : vector<16x256xf32>, vector<256x384xf32>, vector<16x384xf32> -> vector<16x384xf32>
    %93 = vector.broadcast %4 : vector<1x384xf32> to vector<16x384xf32>
    %94 = arith.addf %92, %93 : vector<16x384xf32>
    %cst_24 = arith.constant dense<0.000000e+00> : vector<16x128xf32>
    %95 = tpu.matmul %90, %5, %cst_24 {dimension_numbers = #tpu.dot_dimension_numbers<[1], [0], [0], [1], [0, 0, 1, 1], [], []>} : vector<16x128xf32>, vector<128x128xf32>, vector<16x128xf32> -> vector<16x128xf32>
    %96 = vector.broadcast %6 : vector<1x128xf32> to vector<16x128xf32>
    %97 = arith.addf %95, %96 : vector<16x128xf32>
    %98 = vector.extract_strided_slice %94 {offsets = [0, 0], sizes = [16, 128], strides = [1, 1]} : vector<16x384xf32> to vector<16x128xf32>
    %99 = arith.negf %98 : vector<16x128xf32>
    %100 = math.exp %99 : vector<16x128xf32>
    %cst_25 = arith.constant 1.000000e+00 : f32
    %101 = vector.broadcast %cst_25 : f32 to vector<16x128xf32>
    %102 = arith.addf %101, %100 : vector<16x128xf32>
    %103 = arith.divf %101, %102 : vector<16x128xf32>
    %104 = vector.extract_strided_slice %94 {offsets = [0, 128], sizes = [16, 128], strides = [1, 1]} : vector<16x384xf32> to vector<16x128xf32>
    %105 = arith.negf %104 : vector<16x128xf32>
    %106 = math.exp %105 : vector<16x128xf32>
    %cst_26 = arith.constant 1.000000e+00 : f32
    %107 = vector.broadcast %cst_26 : f32 to vector<16x128xf32>
    %108 = arith.addf %107, %106 : vector<16x128xf32>
    %109 = arith.divf %107, %108 : vector<16x128xf32>
    %110 = vector.extract_strided_slice %94 {offsets = [0, 256], sizes = [16, 128], strides = [1, 1]} : vector<16x384xf32> to vector<16x128xf32>
    %111 = arith.mulf %103, %97 : vector<16x128xf32>
    %112 = arith.addf %110, %111 : vector<16x128xf32>
    %113 = math.tanh %112 : vector<16x128xf32>
    %cst_27 = arith.constant 1.000000e+00 : f32
    %114 = vector.broadcast %cst_27 : f32 to vector<16x128xf32>
    %115 = arith.subf %114, %109 : vector<16x128xf32>
    %116 = arith.mulf %115, %113 : vector<16x128xf32>
    %117 = arith.mulf %109, %90 : vector<16x128xf32>
    %118 = arith.addf %116, %117 : vector<16x128xf32>
    %c0_28 = arith.constant 0 : index
    %c0_29 = arith.constant 0 : index
    %119 = vector.load %arg7[%c0_28, %c0_29] : memref<16x128xf32, #tpu.memory_space<vmem>>, vector<16x128xf32>
    tpu.vector_store %arg7[%c0_28, %c0_29], %118 {strides = array<i32>} : memref<16x128xf32, #tpu.memory_space<vmem>>, vector<16x128xf32>,
    %c0_30 = arith.constant 0 : index
    %c0_31 = arith.constant 0 : index
    %120 = vector.load %arg6[%c0_30, %c0_31] : memref<128x128xf32, #tpu.memory_space<vmem>>, vector<128x128xf32>
    %cst_32 = arith.constant dense<0.000000e+00> : vector<16x128xf32>
    %121 = tpu.matmul %118, %120, %cst_32 {dimension_numbers = #tpu.dot_dimension_numbers<[1], [0], [0], [1], [0, 0, 1, 1], [], []>} : vector<16x128xf32>, vector<128x128xf32>, vector<16x128xf32> -> vector<16x128xf32>
    %c0_33 = arith.constant 0 : index
    %c0_34 = arith.constant 0 : index
    %122 = vector.load %arg8[%c0_33, %c0_34] : memref<16x128xf32, #tpu.memory_space<vmem>>, vector<16x128xf32>
    tpu.vector_store %arg8[%c0_33, %c0_34], %121 {strides = array<i32>} : memref<16x128xf32, #tpu.memory_space<vmem>>, vector<16x128xf32>,
    return
  }
  func.func @transform_0(%arg0: i32) -> (i32, i32) {
    %c0_i32 = arith.constant 0 : i32
    %c0_i32_0 = arith.constant 0 : i32
    %c0_i32_1 = arith.constant 0 : i32
    return %c0_i32, %c0_i32_0 : i32, i32
  }
  func.func @transform_1(%arg0: i32) -> (i32, i32) {
    %c0_i32 = arith.constant 0 : i32
    %c0_i32_0 = arith.constant 0 : i32
    %c0_i32_1 = arith.constant 0 : i32
    return %c0_i32, %c0_i32_0 : i32, i32
  }
  func.func @transform_2(%arg0: i32) -> (i32, i32) {
    %c0_i32 = arith.constant 0 : i32
    %c0_i32_0 = arith.constant 0 : i32
    %c0_i32_1 = arith.constant 0 : i32
    return %c0_i32, %c0_i32_0 : i32, i32
  }
  func.func @transform_3(%arg0: i32) -> (i32, i32) {
    %c0_i32 = arith.constant 0 : i32
    %c0_i32_0 = arith.constant 0 : i32
    %c0_i32_1 = arith.constant 0 : i32
    return %c0_i32, %c0_i32_0 : i32, i32
  }
  func.func @transform_4(%arg0: i32) -> (i32, i32) {
    %c0_i32 = arith.constant 0 : i32
    %c0_i32_0 = arith.constant 0 : i32
    %c0_i32_1 = arith.constant 0 : i32
    return %c0_i32, %c0_i32_0 : i32, i32
  }
  func.func @transform_5(%arg0: i32) -> (i32, i32) {
    %c0_i32 = arith.constant 0 : i32
    %c0_i32_0 = arith.constant 0 : i32
    %c0_i32_1 = arith.constant 0 : i32
    return %c0_i32, %c0_i32_0 : i32, i32
  }
  func.func @transform_6(%arg0: i32) -> (i32, i32) {
    %c0_i32 = arith.constant 0 : i32
    %c0_i32_0 = arith.constant 0 : i32
    return %arg0, %c0_i32 : i32, i32
  }
  func.func @transform_7(%arg0: i32) -> (i32, i32) {
    %c0_i32 = arith.constant 0 : i32
    %c0_i32_0 = arith.constant 0 : i32
    return %arg0, %c0_i32 : i32, i32
  }
}

</mosaic_0001>

<llo_original>
// kernel: tpu_custom_call.1
$region0: #{tpu_custom_call.1}
  #allocation0 [shape = 'u32[]', space=smem, size = 0x4, offset = 0x4, fixed_abs, tag = 'smem constant byte address 0x4 - core index']
  #allocation1 [shape = 'u32[144,128]{1,0:T(1,128)}', space=vmem, size = 0x12000, scoped, tag = 'internal scratch']
  %s0 = inlined_call_operand.hbm [shape: f32[1,128], index: 0, kind: input, shape index: {}]
  %s1 = inlined_call_operand.hbm [shape: f32[256,384], index: 1, kind: input, shape index: {}]
  %s2 = inlined_call_operand.vmem [shape: f32[1,384], index: 2, kind: input, shape index: {}]
  %s3 = inlined_call_operand.hbm [shape: f32[128,128], index: 3, kind: input, shape index: {}]
  %s4 = inlined_call_operand.vmem [shape: f32[1,128], index: 4, kind: input, shape index: {}]
  %s5 = inlined_call_operand.hbm [shape: f32[128,128], index: 5, kind: input, shape index: {}]
  %s6 = inlined_call_operand.hbm [shape: f32[16,128], index: 6, kind: output, shape index: {0}]
  %s7 = inlined_call_operand.hbm [shape: f32[16,128], index: 7, kind: output, shape index: {1}]
  %8 = xla_tuple %s6, %s7
  %s9 = sld [smem:[#allocation0]]
  $region58: #{tpu_custom_call.1} parent=0
    _
  %s11 = ssub.s32 1, %s9
  %s12 = scalar_select 0, %s11, %s9
  $region1: #{tpu_custom_call.1} parent=0
    #allocation2 [shape = 'u8[512]{0}', space=vmem, size = 0x400, scoped, tag = 'input window, operand 0, single buffered']
    #allocation3 [shape = 's32[1]{0}', space=sflag, size = 0x4, scoped, tag = 'scoped memory for tpu_custom_call.1']
    #allocation4 [shape = 's32[1]{0}', space=sflag, size = 0x4, scoped, tag = 'scoped memory for tpu_custom_call.1']
    #allocation5 [shape = 'u8[393216]{0}', space=vmem, size = 0x60000, scoped, tag = 'input window, operand 1, single buffered']
    #allocation6 [shape = 's32[1]{0}', space=sflag, size = 0x4, scoped, tag = 'scoped memory for tpu_custom_call.1']
    #allocation7 [shape = 'u8[65536]{0}', space=vmem, size = 0x10000, scoped, tag = 'input window, operand 3, single buffered']
    #allocation8 [shape = 'u8[65536]{0}', space=vmem, size = 0x10000, scoped, tag = 'input window, operand 5, single buffered']
    #allocation9 [shape = 's32[1]{0}', space=sflag, size = 0x4, scoped, tag = 'scoped memory for tpu_custom_call.1']
    #allocation10 [shape = 'u8[8192]{0}', space=vmem, size = 0x2000, scoped, tag = 'output window, operand 0, single buffered']
    #allocation11 [shape = 'u8[8192]{0}', space=vmem, size = 0x2000, scoped, tag = 'output window, operand 1, single buffered']
    #allocation12 [shape = 's32[1]{0}', space=sflag, size = 0x4, scoped, tag = 'scoped memory for tpu_custom_call.1']
    %13 = vsyncpa [#allocation3], 0
    %14 = vsyncpa [#allocation6], 0
    %15 = vsyncpa [#allocation9], 0
    %16 = vsyncpa [#allocation4], 0
    %17 = vsyncpa [#allocation12], 0
    // Predicated region
    $region2: #{tpu_custom_call.1} parent=1 // pred_check
      _
    $region3: #{tpu_custom_call.1} parent=1 // pred_check_branch
      %19 = sbr.rel (0) target = $region5
    $region4: #{tpu_custom_call.1} parent=1 // pred_region
      %s21 = ssub.s32 16, 16
      %22 = vsyncadd [#allocation3], %s21
      %s24 = sshll.u32 [#allocation2], 4
      %s25 = int_to_ptr.vmem [resolvable:$true] %s24
      %27 = dma.hbm_to_vmem [thread:$0]  %s0, 16, %s25, [#allocation3]
    $region5: #{tpu_custom_call.1} parent=1 // pred_fallthru
      _
    // Predicated region
    $region6: #{tpu_custom_call.1} parent=1 // pred_check
      _
    $region7: #{tpu_custom_call.1} parent=1 // pred_check_branch
      %29 = sbr.rel (0) target = $region9
    $region8: #{tpu_custom_call.1} parent=1 // pred_region
      %s31 = ssub.s32 12288, 12288
      %32 = vsyncadd [#allocation6], %s31
      %s33 = sshll.u32 [#allocation5], 4
      %s34 = int_to_ptr.vmem [resolvable:$true] %s33
      %39 = dma.hbm_to_vmem [thread:$0]  %s1, 12288, %s34, [#allocation6], 384, 384, 24
    $region9: #{tpu_custom_call.1} parent=1 // pred_fallthru
      _
    // Predicated region
    $region10: #{tpu_custom_call.1} parent=1 // pred_check
      _
    $region11: #{tpu_custom_call.1} parent=1 // pred_check_branch
      %41 = sbr.rel (0) target = $region13
    $region12: #{tpu_custom_call.1} parent=1 // pred_region
      _
    $region13: #{tpu_custom_call.1} parent=1 // pred_fallthru
      _
    // Predicated region
    $region14: #{tpu_custom_call.1} parent=1 // pred_check
      _
    $region15: #{tpu_custom_call.1} parent=1 // pred_check_branch
      %43 = sbr.rel (0) target = $region17
    $region16: #{tpu_custom_call.1} parent=1 // pred_region
      %s45 = ssub.s32 2048, 2048
      %46 = vsyncadd [#allocation6], %s45
      %s47 = sshll.u32 [#allocation7], 4
      %s48 = int_to_ptr.vmem [resolvable:$true] %s47
      %53 = dma.hbm_to_vmem [thread:$0]  %s3, 2048, %s48, [#allocation6], 128, 128, 8
    $region17: #{tpu_custom_call.1} parent=1 // pred_fallthru
      _
    // Predicated region
    $region18: #{tpu_custom_call.1} parent=1 // pred_check
      _
    $region19: #{tpu_custom_call.1} parent=1 // pred_check_branch
      %55 = sbr.rel (0) target = $region21
    $region20: #{tpu_custom_call.1} parent=1 // pred_region
      _
    $region21: #{tpu_custom_call.1} parent=1 // pred_fallthru
      _
    // Predicated region
    $region22: #{tpu_custom_call.1} parent=1 // pred_check
      _
    $region23: #{tpu_custom_call.1} parent=1 // pred_check_branch
      %57 = sbr.rel (0) target = $region25
    $region24: #{tpu_custom_call.1} parent=1 // pred_region
      %s59 = ssub.s32 2048, 2048
      %60 = vsyncadd [#allocation9], %s59
      %s61 = sshll.u32 [#allocation8], 4
      %s62 = int_to_ptr.vmem [resolvable:$true] %s61
      %67 = dma.hbm_to_vmem [thread:$0]  %s5, 2048, %s62, [#allocation9], 128, 128, 8
    $region25: #{tpu_custom_call.1} parent=1 // pred_fallthru
      _
    // Predicated region
    $region26: #{tpu_custom_call.1} parent=1 // pred_check
      _
    $region27: #{tpu_custom_call.1} parent=1 // pred_check_branch
      %69 = sbr.rel (0) target = $region29
    $region28: #{tpu_custom_call.1} parent=1 // pred_region
      %70 = dma.done [#allocation3], 16
    $region29: #{tpu_custom_call.1} parent=1 // pred_fallthru
      _
    // Predicated region
    $region30: #{tpu_custom_call.1} parent=1 // pred_check
      _
    $region31: #{tpu_custom_call.1} parent=1 // pred_check_branch
      %72 = sbr.rel (0) target = $region33
    $region32: #{tpu_custom_call.1} parent=1 // pred_region
      %73 = dma.done [#allocation6], 12288
    $region33: #{tpu_custom_call.1} parent=1 // pred_fallthru
      _
    // Predicated region
    $region34: #{tpu_custom_call.1} parent=1 // pred_check
      _
    $region35: #{tpu_custom_call.1} parent=1 // pred_check_branch
      %75 = sbr.rel (0) target = $region37
    $region36: #{tpu_custom_call.1} parent=1 // pred_region
      %76 = dma.done [#allocation6], 2048
    $region37: #{tpu_custom_call.1} parent=1 // pred_fallthru
      _
    // Predicated region
    $region38: #{tpu_custom_call.1} parent=1 // pred_check
      _
    $region39: #{tpu_custom_call.1} parent=1 // pred_check_branch
      %78 = sbr.rel (0) target = $region41
    $region40: #{tpu_custom_call.1} parent=1 // pred_region
      %79 = dma.done [#allocation9], 2048
    $region41: #{tpu_custom_call.1} parent=1 // pred_fallthru
      _
    %v80 = vld [vmem:[#allocation2] sm:$0x1]
    %v82 = vlaneseq
    %v83 = vshrl.u32 %v82, 7
    %v84 = vsub.s32 0, %v83
    %v85 = vrot.slane %v80, %v84
    %v87 = vld [vmem:[#allocation5] sm:$0xff]
    %v88 = vld [vmem:[#allocation5 + $0x8] sm:$0xff]
    %v89 = vld [vmem:[#allocation5 + $0x10] sm:$0xff]
    %v90 = vld [vmem:[#allocation5 + $0x18] sm:$0xff]
    %v91 = vld [vmem:[#allocation5 + $0x20] sm:$0xff]
    %v92 = vld [vmem:[#allocation5 + $0x28] sm:$0xff]
    %v93 = vld [vmem:[#allocation5 + $0x30] sm:$0xff]
    %v94 = vld [vmem:[#allocation5 + $0x38] sm:$0xff]
    %v95 = vld [vmem:[#allocation5 + $0x40] sm:$0xff]
    %v96 = vld [vmem:[#allocation5 + $0x48] sm:$0xff]
    %v97 = vld [vmem:[#allocation5 + $0x50] sm:$0xff]
    %v98 = vld [vmem:[#allocation5 + $0x58] sm:$0xff]
    %v99 = vld [vmem:[#allocation5 + $0x60] sm:$0xff]
    %v100 = vld [vmem:[#allocation5 + $0x68] sm:$0xff]
    %v101 = vld [vmem:[#allocation5 + $0x70] sm:$0xff]
    %v102 = vld [vmem:[#allocation5 + $0x78] sm:$0xff]
    %v103 = vld [vmem:[#allocation5 + $0x80] sm:$0xff]
    %v104 = vld [vmem:[#allocation5 + $0x88] sm:$0xff]
    %v105 = vld [vmem:[#allocation5 + $0x90] sm:$0xff]
    %v106 = vld [vmem:[#allocation5 + $0x98] sm:$0xff]
    %v107 = vld [vmem:[#allocation5 + $0xa0] sm:$0xff]
    %v108 = vld [vmem:[#allocation5 + $0xa8] sm:$0xff]
    %v109 = vld [vmem:[#allocation5 + $0xb0] sm:$0xff]
    %v110 = vld [vmem:[#allocation5 + $0xb8] sm:$0xff]
    %v111 = vld [vmem:[#allocation5 + $0xc0] sm:$0xff]
    %v112 = vld [vmem:[#allocation5 + $0xc8] sm:$0xff]
    %v113 = vld [vmem:[#allocation5 + $0xd0] sm:$0xff]
    %v114 = vld [vmem:[#allocation5 + $0xd8] sm:$0xff]
    %v115 = vld [vmem:[#allocation5 + $0xe0] sm:$0xff]
    %v116 = vld [vmem:[#allocation5 + $0xe8] sm:$0xff]
    %v117 = vld [vmem:[#allocation5 + $0xf0] sm:$0xff]
    %v118 = vld [vmem:[#allocation5 + $0xf8] sm:$0xff]
    %v119 = vld [vmem:[#allocation5 + $0x100] sm:$0xff]
    %v120 = vld [vmem:[#allocation5 + $0x108] sm:$0xff]
    %v121 = vld [vmem:[#allocation5 + $0x110] sm:$0xff]
    %v122 = vld [vmem:[#allocation5 + $0x118] sm:$0xff]
    %v123 = vld [vmem:[#allocation5 + $0x120] sm:$0xff]
    %v124 = vld [vmem:[#allocation5 + $0x128] sm:$0xff]
    %v125 = vld [vmem:[#allocation5 + $0x130] sm:$0xff]
    %v126 = vld [vmem:[#allocation5 + $0x138] sm:$0xff]
    %v127 = vld [vmem:[#allocation5 + $0x140] sm:$0xff]
    %v128 = vld [vmem:[#allocation5 + $0x148] sm:$0xff]
    %v129 = vld [vmem:[#allocation5 + $0x150] sm:$0xff]
    %v130 = vld [vmem:[#allocation5 + $0x158] sm:$0xff]
    %v131 = vld [vmem:[#allocation5 + $0x160] sm:$0xff]
    %v132 = vld [vmem:[#allocation5 + $0x168] sm:$0xff]
    %v133 = vld [vmem:[#allocation5 + $0x170] sm:$0xff]
    %v134 = vld [vmem:[#allocation5 + $0x178] sm:$0xff]
    %v135 = vld [vmem:[#allocation5 + $0x180] sm:$0xff]
    %v136 = vld [vmem:[#allocation5 + $0x188] sm:$0xff]
    %v137 = vld [vmem:[#allocation5 + $0x190] sm:$0xff]
    %v138 = vld [vmem:[#allocation5 + $0x198] sm:$0xff]
    %v139 = vld [vmem:[#allocation5 + $0x1a0] sm:$0xff]
    %v140 = vld [vmem:[#allocation5 + $0x1a8] sm:$0xff]
    %v141 = vld [vmem:[#allocation5 + $0x1b0] sm:$0xff]
    %v142 = vld [vmem:[#allocation5 + $0x1b8] sm:$0xff]
    %v143 = vld [vmem:[#allocation5 + $0x1c0] sm:$0xff]
    %v144 = vld [vmem:[#allocation5 + $0x1c8] sm:$0xff]
    %v145 = vld [vmem:[#allocation5 + $0x1d0] sm:$0xff]
    %v146 = vld [vmem:[#allocation5 + $0x1d8] sm:$0xff]
    %v147 = vld [vmem:[#allocation5 + $0x1e0] sm:$0xff]
    %v148 = vld [vmem:[#allocation5 + $0x1e8] sm:$0xff]
    %v149 = vld [vmem:[#allocation5 + $0x1f0] sm:$0xff]
    %v150 = vld [vmem:[#allocation5 + $0x1f8] sm:$0xff]
    %v151 = vld [vmem:[#allocation5 + $0x200] sm:$0xff]
    %v152 = vld [vmem:[#allocation5 + $0x208] sm:$0xff]
    %v153 = vld [vmem:[#allocation5 + $0x210] sm:$0xff]
    %v154 = vld [vmem:[#allocation5 + $0x218] sm:$0xff]
    %v155 = vld [vmem:[#allocation5 + $0x220] sm:$0xff]
    %v156 = vld [vmem:[#allocation5 + $0x228] sm:$0xff]
    %v157 = vld [vmem:[#allocation5 + $0x230] sm:$0xff]
    %v158 = vld [vmem:[#allocation5 + $0x238] sm:$0xff]
    %v159 = vld [vmem:[#allocation5 + $0x240] sm:$0xff]
    %v160 = vld [vmem:[#allocation5 + $0x248] sm:$0xff]
    %v161 = vld [vmem:[#allocation5 + $0x250] sm:$0xff]
    %v162 = vld [vmem:[#allocation5 + $0x258] sm:$0xff]
    %v163 = vld [vmem:[#allocation5 + $0x260] sm:$0xff]
    %v164 = vld [vmem:[#allocation5 + $0x268] sm:$0xff]
    %v165 = vld [vmem:[#allocation5 + $0x270] sm:$0xff]
    %v166 = vld [vmem:[#allocation5 + $0x278] sm:$0xff]
    %v167 = vld [vmem:[#allocation5 + $0x280] sm:$0xff]
    %v168 = vld [vmem:[#allocation5 + $0x288] sm:$0xff]
    %v169 = vld [vmem:[#allocation5 + $0x290] sm:$0xff]
    %v170 = vld [vmem:[#allocation5 + $0x298] sm:$0xff]
    %v171 = vld [vmem:[#allocation5 + $0x2a0] sm:$0xff]
    %v172 = vld [vmem:[#allocation5 + $0x2a8] sm:$0xff]
    %v173 = vld [vmem:[#allocation5 + $0x2b0] sm:$0xff]
    %v174 = vld [vmem:[#allocation5 + $0x2b8] sm:$0xff]
    %v175 = vld [vmem:[#allocation5 + $0x2c0] sm:$0xff]
    %v176 = vld [vmem:[#allocation5 + $0x2c8] sm:$0xff]
    %v177 = vld [vmem:[#allocation5 + $0x2d0] sm:$0xff]
    %v178 = vld [vmem:[#allocation5 + $0x2d8] sm:$0xff]
    %v179 = vld [vmem:[#allocation5 + $0x2e0] sm:$0xff]
    %v180 = vld [vmem:[#allocation5 + $0x2e8] sm:$0xff]
    %v181 = vld [vmem:[#allocation5 + $0x2f0] sm:$0xff]
    %v182 = vld [vmem:[#allocation5 + $0x2f8] sm:$0xff]
    %v183 = vld [vmem:[%s2] sm:$0x7]
    %v184 = vld [vmem:[#allocation7] sm:$0xff]
    %v185 = vld [vmem:[#allocation7 + $0x8] sm:$0xff]
    %v186 = vld [vmem:[#allocation7 + $0x10] sm:$0xff]
    %v187 = vld [vmem:[#allocation7 + $0x18] sm:$0xff]
    %v188 = vld [vmem:[#allocation7 + $0x20] sm:$0xff]
    %v189 = vld [vmem:[#allocation7 + $0x28] sm:$0xff]
    %v190 = vld [vmem:[#allocation7 + $0x30] sm:$0xff]
    %v191 = vld [vmem:[#allocation7 + $0x38] sm:$0xff]
    %v192 = vld [vmem:[#allocation7 + $0x40] sm:$0xff]
    %v193 = vld [vmem:[#allocation7 + $0x48] sm:$0xff]
    %v194 = vld [vmem:[#allocation7 + $0x50] sm:$0xff]
    %v195 = vld [vmem:[#allocation7 + $0x58] sm:$0xff]
    %v196 = vld [vmem:[#allocation7 + $0x60] sm:$0xff]
    %v197 = vld [vmem:[#allocation7 + $0x68] sm:$0xff]
    %v198 = vld [vmem:[#allocation7 + $0x70] sm:$0xff]
    %v199 = vld [vmem:[#allocation7 + $0x78] sm:$0xff]
    %v200 = vld [vmem:[%s4] sm:$0x1]
    %v202 = vlaneseq
    %v203 = vshrl.u32 %v202, 7
    %v204 = vsub.s32 0, %v203
    %v205 = vrot.slane %v183, %v204
    %v206 = vlaneseq
    %v207 = vshrl.u32 %v206, 7
    %v208 = vsub.s32 1, %v207
    %v209 = vrot.slane %v183, %v208
    %v210 = vlaneseq
    %v211 = vshrl.u32 %v210, 7
    %v212 = vsub.s32 2, %v211
    %v213 = vrot.slane %v183, %v212
    %217 = vmatprep.subr.mxu0 %v88
    %218 = vmatpush1.msra.mxu0 %v87
    %219 = vmatprep.subr.mxu0 %v91
    %220 = vmatpush1.msra.mxu0 %v90
    %221 = vmatprep.subr.mxu0 %v94
    %222 = vmatpush1.msra.mxu0 %v93
    %223 = vmatprep.subr.mxu0 %v97
    %224 = vmatpush1.msra.mxu0 %v96
    %225 = vmatprep.subr.mxu0 %v100
    %226 = vmatpush1.msra.mxu0 %v99
    %227 = vmatprep.subr.mxu0 %v103
    %228 = vmatpush1.msra.mxu0 %v102
    %229 = vmatprep.subr.mxu0 %v106
    %230 = vmatpush1.msra.mxu0 %v105
    %231 = vmatprep.subr.mxu0 %v109
    %232 = vmatpush1.msra.mxu0 %v108
    %233 = vmatprep.subr.mxu0 %v112
    %234 = vmatpush1.msra.mxu0 %v111
    %235 = vmatprep.subr.mxu0 %v115
    %236 = vmatpush1.msra.mxu0 %v114
    %237 = vmatprep.subr.mxu0 %v118
    %238 = vmatpush1.msra.mxu0 %v117
    %239 = vmatprep.subr.mxu0 %v121
    %240 = vmatpush1.msra.mxu0 %v120
    %241 = vmatprep.subr.mxu0 %v124
    %242 = vmatpush1.msra.mxu0 %v123
    %243 = vmatprep.subr.mxu0 %v127
    %244 = vmatpush1.msra.mxu0 %v126
    %245 = vmatprep.subr.mxu0 %v130
    %246 = vmatpush1.msra.mxu0 %v129
    %247 = vmatprep.subr.mxu0 %v133
    %248 = vmatpush1.msra.mxu0 %v132
    %249 = vmatprep.subr.mxu0 %v136
    %250 = vmatpush1.msra.mxu0 %v135
    %251 = vmatprep.subr.mxu0 %v139
    %252 = vmatpush1.msra.mxu0 %v138
    %253 = vmatprep.subr.mxu0 %v142
    %254 = vmatpush1.msra.mxu0 %v141
    %255 = vmatprep.subr.mxu0 %v145
    %256 = vmatpush1.msra.mxu0 %v144
    %257 = vmatprep.subr.mxu0 %v148
    %258 = vmatpush1.msra.mxu0 %v147
    %259 = vmatprep.subr.mxu0 %v151
    %260 = vmatpush1.msra.mxu0 %v150
    %261 = vmatprep.subr.mxu0 %v154
    %262 = vmatpush1.msra.mxu0 %v153
    %263 = vmatprep.subr.mxu0 %v157
    %264 = vmatpush1.msra.mxu0 %v156
    %265 = vmatprep.subr.mxu0 %v160
    %266 = vmatpush1.msra.mxu0 %v159
    %267 = vmatprep.subr.mxu0 %v163
    %268 = vmatpush1.msra.mxu0 %v162
    %269 = vmatprep.subr.mxu0 %v166
    %270 = vmatpush1.msra.mxu0 %v165
    %271 = vmatprep.subr.mxu0 %v169
    %272 = vmatpush1.msra.mxu0 %v168
    %273 = vmatprep.subr.mxu0 %v172
    %274 = vmatpush1.msra.mxu0 %v171
    %275 = vmatprep.subr.mxu0 %v175
    %276 = vmatpush1.msra.mxu0 %v174
    %277 = vmatprep.subr.mxu0 %v178
    %278 = vmatpush1.msra.mxu0 %v177
    %279 = vmatprep.subr.mxu0 %v181
    %280 = vmatpush1.msra.mxu0 %v180
    %281 = vmatprep.mubr.f32.mxu0 %v85
    %282 = vmatmul.mubr.f32.gmra.mrb[0].mxu0 %v85
    %v283 = vpop.f32.mrb[0].mxu0
    %v284 = vadd.f32 %v205, %v283
    %v285 = vpop.f32.mrb[0].mxu0
    %v286 = vadd.f32 %v209, %v285
    %287 = vmatprep.mubr.f32.mxu0 %v85
    %288 = vmatmul.mubr.f32.gmra.mrb[0].mxu0 %v85
    %v289 = vpop.f32.mrb[0].mxu0
    %v290 = vadd.f32 %v205, %v289
    %v291 = vpop.f32.mrb[0].mxu0
    %v292 = vadd.f32 %v209, %v291
    %293 = vdwg.mxu0
    %294 = vmatprep.subr.mxu0 0.0
    %295 = vmatpush1.msra.mxu0 %v89
    %296 = vmatprep.subr.mxu0 0.0
    %297 = vmatpush1.msra.mxu0 %v92
    %298 = vmatprep.subr.mxu0 0.0
    %299 = vmatpush1.msra.mxu0 %v95
    %300 = vmatprep.subr.mxu0 0.0
    %301 = vmatpush1.msra.mxu0 %v98
    %302 = vmatprep.subr.mxu0 0.0
    %303 = vmatpush1.msra.mxu0 %v101
    %304 = vmatprep.subr.mxu0 0.0
    %305 = vmatpush1.msra.mxu0 %v104
    %306 = vmatprep.subr.mxu0 0.0
    %307 = vmatpush1.msra.mxu0 %v107
    %308 = vmatprep.subr.mxu0 0.0
    %309 = vmatpush1.msra.mxu0 %v110
    %310 = vmatprep.subr.mxu0 0.0
    %311 = vmatpush1.msra.mxu0 %v113
    %312 = vmatprep.subr.mxu0 0.0
    %313 = vmatpush1.msra.mxu0 %v116
    %314 = vmatprep.subr.mxu0 0.0
    %315 = vmatpush1.msra.mxu0 %v119
    %316 = vmatprep.subr.mxu0 0.0
    %317 = vmatpush1.msra.mxu0 %v122
    %318 = vmatprep.subr.mxu0 0.0
    %319 = vmatpush1.msra.mxu0 %v125
    %320 = vmatprep.subr.mxu0 0.0
    %321 = vmatpush1.msra.mxu0 %v128
    %322 = vmatprep.subr.mxu0 0.0
    %323 = vmatpush1.msra.mxu0 %v131
    %324 = vmatprep.subr.mxu0 0.0
    %325 = vmatpush1.msra.mxu0 %v134
    %326 = vmatprep.subr.mxu0 0.0
    %327 = vmatpush1.msra.mxu0 %v137
    %328 = vmatprep.subr.mxu0 0.0
    %329 = vmatpush1.msra.mxu0 %v140
    %330 = vmatprep.subr.mxu0 0.0
    %331 = vmatpush1.msra.mxu0 %v143
    %332 = vmatprep.subr.mxu0 0.0
    %333 = vmatpush1.msra.mxu0 %v146
    %334 = vmatprep.subr.mxu0 0.0
    %335 = vmatpush1.msra.mxu0 %v149
    %336 = vmatprep.subr.mxu0 0.0
    %337 = vmatpush1.msra.mxu0 %v152
    %338 = vmatprep.subr.mxu0 0.0
    %339 = vmatpush1.msra.mxu0 %v155
    %340 = vmatprep.subr.mxu0 0.0
    %341 = vmatpush1.msra.mxu0 %v158
    %342 = vmatprep.subr.mxu0 0.0
    %343 = vmatpush1.msra.mxu0 %v161
    %344 = vmatprep.subr.mxu0 0.0
    %345 = vmatpush1.msra.mxu0 %v164
    %346 = vmatprep.subr.mxu0 0.0
    %347 = vmatpush1.msra.mxu0 %v167
    %348 = vmatprep.subr.mxu0 0.0
    %349 = vmatpush1.msra.mxu0 %v170
    %350 = vmatprep.subr.mxu0 0.0
    %351 = vmatpush1.msra.mxu0 %v173
    %352 = vmatprep.subr.mxu0 0.0
    %353 = vmatpush1.msra.mxu0 %v176
    %354 = vmatprep.subr.mxu0 0.0
    %355 = vmatpush1.msra.mxu0 %v179
    %356 = vmatprep.subr.mxu0 0.0
    %357 = vmatpush1.msra.mxu0 %v182
    %358 = vmatprep.mubr.f32.mxu0 %v85
    %359 = vmatmul.mubr.f32.gmra.mrb[0].mxu0 %v85
    %v360 = vpop.f32.mrb[0].mxu0
    %v361 = vadd.f32 %v213, %v360
    %v362 = vpop.f32.mrb[0].mxu0
    %363 = vmatprep.mubr.f32.mxu0 %v85
    %364 = vmatmul.mubr.f32.gmra.mrb[0].mxu0 %v85
    %v365 = vpop.f32.mrb[0].mxu0
    %v366 = vadd.f32 %v213, %v365
    %v367 = vpop.f32.mrb[0].mxu0
    %368 = vdwg.mxu0
    %v370 = vlaneseq
    %v371 = vshrl.u32 %v370, 7
    %v372 = vsub.s32 0, %v371
    %v373 = vrot.slane %v200, %v372
    %375 = vmatprep.subr.mxu0 0.0
    %376 = vmatpush1.msra.mxu0 %v184
    %377 = vmatprep.subr.mxu0 0.0
    %378 = vmatpush1.msra.mxu0 %v185
    %379 = vmatprep.subr.mxu0 0.0
    %380 = vmatpush1.msra.mxu0 %v186
    %381 = vmatprep.subr.mxu0 0.0
    %382 = vmatpush1.msra.mxu0 %v187
    %383 = vmatprep.subr.mxu0 0.0
    %384 = vmatpush1.msra.mxu0 %v188
    %385 = vmatprep.subr.mxu0 0.0
    %386 = vmatpush1.msra.mxu0 %v189
    %387 = vmatprep.subr.mxu0 0.0
    %388 = vmatpush1.msra.mxu0 %v190
    %389 = vmatprep.subr.mxu0 0.0
    %390 = vmatpush1.msra.mxu0 %v191
    %391 = vmatprep.subr.mxu0 0.0
    %392 = vmatpush1.msra.mxu0 %v192
    %393 = vmatprep.subr.mxu0 0.0
    %394 = vmatpush1.msra.mxu0 %v193
    %395 = vmatprep.subr.mxu0 0.0
    %396 = vmatpush1.msra.mxu0 %v194
    %397 = vmatprep.subr.mxu0 0.0
    %398 = vmatpush1.msra.mxu0 %v195
    %399 = vmatprep.subr.mxu0 0.0
    %400 = vmatpush1.msra.mxu0 %v196
    %401 = vmatprep.subr.mxu0 0.0
    %402 = vmatpush1.msra.mxu0 %v197
    %403 = vmatprep.subr.mxu0 0.0
    %404 = vmatpush1.msra.mxu0 %v198
    %405 = vmatprep.subr.mxu0 0.0
    %406 = vmatpush1.msra.mxu0 %v199
    %407 = vmatprep.subr.mxu0 0.0
    %408 = vmatpush1.msra.mxu0 0.0
    %409 = vmatprep.subr.mxu0 0.0
    %410 = vmatpush1.msra.mxu0 0.0
    %411 = vmatprep.subr.mxu0 0.0
    %412 = vmatpush1.msra.mxu0 0.0
    %413 = vmatprep.subr.mxu0 0.0
    %414 = vmatpush1.msra.mxu0 0.0
    %415 = vmatprep.subr.mxu0 0.0
    %416 = vmatpush1.msra.mxu0 0.0
    %417 = vmatprep.subr.mxu0 0.0
    %418 = vmatpush1.msra.mxu0 0.0
    %419 = vmatprep.subr.mxu0 0.0
    %420 = vmatpush1.msra.mxu0 0.0
    %421 = vmatprep.subr.mxu0 0.0
    %422 = vmatpush1.msra.mxu0 0.0
    %423 = vmatprep.subr.mxu0 0.0
    %424 = vmatpush1.msra.mxu0 0.0
    %425 = vmatprep.subr.mxu0 0.0
    %426 = vmatpush1.msra.mxu0 0.0
    %427 = vmatprep.subr.mxu0 0.0
    %428 = vmatpush1.msra.mxu0 0.0
    %429 = vmatprep.subr.mxu0 0.0
    %430 = vmatpush1.msra.mxu0 0.0
    %431 = vmatprep.subr.mxu0 0.0
    %432 = vmatpush1.msra.mxu0 0.0
    %433 = vmatprep.subr.mxu0 0.0
    %434 = vmatpush1.msra.mxu0 0.0
    %435 = vmatprep.subr.mxu0 0.0
    %436 = vmatpush1.msra.mxu0 0.0
    %437 = vmatprep.subr.mxu0 0.0
    %438 = vmatpush1.msra.mxu0 0.0
    %439 = vmatprep.mubr.f32.mxu0 0.0
    %440 = vmatmul.mubr.f32.gmra.mrb[0].mxu0 %v85
    %v441 = vpop.f32.mrb[0].mxu0
    %v442 = vadd.f32 %v373, %v441
    %v443 = vpop.f32.mrb[0].mxu0
    %444 = vmatprep.mubr.f32.mxu0 0.0
    %445 = vmatmul.mubr.f32.gmra.mrb[0].mxu0 %v85
    %v446 = vpop.f32.mrb[0].mxu0
    %v447 = vadd.f32 %v373, %v446
    %v448 = vpop.f32.mrb[0].mxu0
    %449 = vdwg.mxu0
    %v450 = vxor.u32 %v284, 2147483648
    %v451 = vxor.u32 %v290, 2147483648
    %v452 = vmul.f32 %v450, 1.442695
    %v453 = vpow.pop %v452
    %v454 = vmul.f32 %v451, 1.442695
    %v455 = vpow.pop %v454
    %v456 = vadd.f32 %v453, 1.0
    %v457 = vadd.f32 %v455, 1.0
    %v458 = vrcp.pop %v456
    %v459 = vmul.f32 1.0, %v458
    %v460 = vrcp.pop %v457
    %v461 = vmul.f32 1.0, %v460
    %v462 = vxor.u32 %v286, 2147483648
    %v463 = vxor.u32 %v292, 2147483648
    %v464 = vmul.f32 %v462, 1.442695
    %v465 = vpow.pop %v464
    %v466 = vmul.f32 %v463, 1.442695
    %v467 = vpow.pop %v466
    %v468 = vadd.f32 %v465, 1.0
    %v469 = vadd.f32 %v467, 1.0
    %v470 = vrcp.pop %v468
    %v471 = vmul.f32 1.0, %v470
    %v472 = vrcp.pop %v469
    %v473 = vmul.f32 1.0, %v472
    %v474 = vmul.f32 %v459, %v442
    %v475 = vmul.f32 %v461, %v447
    %v476 = vadd.f32 %v361, %v474
    %v477 = vadd.f32 %v366, %v475
    %v478 = vtanh.pop %v476
    %v479 = vtanh.pop %v477
    %v480 = vsub.f32 1.0, %v471
    %v481 = vsub.f32 1.0, %v473
    %v482 = vmul.f32 %v480, %v478
    %v483 = vmul.f32 %v481, %v479
    %v484 = vmul.f32 %v471, %v85
    %v485 = vmul.f32 %v473, %v85
    %v486 = vadd.f32 %v482, %v484
    %v487 = vadd.f32 %v483, %v485
    %488 = vmatprep.subr.mxu0 %v88
    %489 = vmatpush1.msra.mxu0 %v87
    %490 = vmatprep.subr.mxu0 %v91
    %491 = vmatpush1.msra.mxu0 %v90
    %492 = vmatprep.subr.mxu0 %v94
    %493 = vmatpush1.msra.mxu0 %v93
    %494 = vmatprep.subr.mxu0 %v97
    %495 = vmatpush1.msra.mxu0 %v96
    %496 = vmatprep.subr.mxu0 %v100
    %497 = vmatpush1.msra.mxu0 %v99
    %498 = vmatprep.subr.mxu0 %v103
    %499 = vmatpush1.msra.mxu0 %v102
    %500 = vmatprep.subr.mxu0 %v106
    %501 = vmatpush1.msra.mxu0 %v105
    %502 = vmatprep.subr.mxu0 %v109
    %503 = vmatpush1.msra.mxu0 %v108
    %504 = vmatprep.subr.mxu0 %v112
    %505 = vmatpush1.msra.mxu0 %v111
    %506 = vmatprep.subr.mxu0 %v115
    %507 = vmatpush1.msra.mxu0 %v114
    %508 = vmatprep.subr.mxu0 %v118
    %509 = vmatpush1.msra.mxu0 %v117
    %510 = vmatprep.subr.mxu0 %v121
    %511 = vmatpush1.msra.mxu0 %v120
    %512 = vmatprep.subr.mxu0 %v124
    %513 = vmatpush1.msra.mxu0 %v123
    %514 = vmatprep.subr.mxu0 %v127
    %515 = vmatpush1.msra.mxu0 %v126
    %516 = vmatprep.subr.mxu0 %v130
    %517 = vmatpush1.msra.mxu0 %v129
    %518 = vmatprep.subr.mxu0 %v133
    %519 = vmatpush1.msra.mxu0 %v132
    %520 = vmatprep.subr.mxu0 %v136
    %521 = vmatpush1.msra.mxu0 %v135
    %522 = vmatprep.subr.mxu0 %v139
    %523 = vmatpush1.msra.mxu0 %v138
    %524 = vmatprep.subr.mxu0 %v142
    %525 = vmatpush1.msra.mxu0 %v141
    %526 = vmatprep.subr.mxu0 %v145
    %527 = vmatpush1.msra.mxu0 %v144
    %528 = vmatprep.subr.mxu0 %v148
    %529 = vmatpush1.msra.mxu0 %v147
    %530 = vmatprep.subr.mxu0 %v151
    %531 = vmatpush1.msra.mxu0 %v150
    %532 = vmatprep.subr.mxu0 %v154
    %533 = vmatpush1.msra.mxu0 %v153
    %534 = vmatprep.subr.mxu0 %v157
    %535 = vmatpush1.msra.mxu0 %v156
    %536 = vmatprep.subr.mxu0 %v160
    %537 = vmatpush1.msra.mxu0 %v159
    %538 = vmatprep.subr.mxu0 %v163
    %539 = vmatpush1.msra.mxu0 %v162
    %540 = vmatprep.subr.mxu0 %v166
    %541 = vmatpush1.msra.mxu0 %v165
    %542 = vmatprep.subr.mxu0 %v169
    %543 = vmatpush1.msra.mxu0 %v168
    %544 = vmatprep.subr.mxu0 %v172
    %545 = vmatpush1.msra.mxu0 %v171
    %546 = vmatprep.subr.mxu0 %v175
    %547 = vmatpush1.msra.mxu0 %v174
    %548 = vmatprep.subr.mxu0 %v178
    %549 = vmatpush1.msra.mxu0 %v177
    %550 = vmatprep.subr.mxu0 %v181
    %551 = vmatpush1.msra.mxu0 %v180
    %552 = vmatprep.mubr.f32.mxu0 %v486
    %553 = vmatmul.mubr.f32.gmra.mrb[0].mxu0 %v486
    %v554 = vpop.f32.mrb[0].mxu0
    %v555 = vadd.f32 %v205, %v554
    %v556 = vpop.f32.mrb[0].mxu0
    %v557 = vadd.f32 %v209, %v556
    %558 = vmatprep.mubr.f32.mxu0 %v487
    %559 = vmatmul.mubr.f32.gmra.mrb[0].mxu0 %v487
    %v560 = vpop.f32.mrb[0].mxu0
    %v561 = vadd.f32 %v205, %v560
    %v562 = vpop.f32.mrb[0].mxu0
    %v563 = vadd.f32 %v209, %v562
    %564 = vdwg.mxu0
    %565 = vmatprep.subr.mxu0 0.0
    %566 = vmatpush1.msra.mxu0 %v89
    %567 = vmatprep.subr.mxu0 0.0
    %568 = vmatpush1.msra.mxu0 %v92
    %569 = vmatprep.subr.mxu0 0.0
    %570 = vmatpush1.msra.mxu0 %v95
    %571 = vmatprep.subr.mxu0 0.0
    %572 = vmatpush1.msra.mxu0 %v98
    %573 = vmatprep.subr.mxu0 0.0
    %574 = vmatpush1.msra.mxu0 %v101
    %575 = vmatprep.subr.mxu0 0.0
    %576 = vmatpush1.msra.mxu0 %v104
    %577 = vmatprep.subr.mxu0 0.0
    %578 = vmatpush1.msra.mxu0 %v107
    %579 = vmatprep.subr.mxu0 0.0
    %580 = vmatpush1.msra.mxu0 %v110
    %581 = vmatprep.subr.mxu0 0.0
    %582 = vmatpush1.msra.mxu0 %v113
    %583 = vmatprep.subr.mxu0 0.0
    %584 = vmatpush1.msra.mxu0 %v116
    %585 = vmatprep.subr.mxu0 0.0
    %586 = vmatpush1.msra.mxu0 %v119
    %587 = vmatprep.subr.mxu0 0.0
    %588 = vmatpush1.msra.mxu0 %v122
    %589 = vmatprep.subr.mxu0 0.0
    %590 = vmatpush1.msra.mxu0 %v125
    %591 = vmatprep.subr.mxu0 0.0
    %592 = vmatpush1.msra.mxu0 %v128
    %593 = vmatprep.subr.mxu0 0.0
    %594 = vmatpush1.msra.mxu0 %v131
    %595 = vmatprep.subr.mxu0 0.0
    %596 = vmatpush1.msra.mxu0 %v134
    %597 = vmatprep.subr.mxu0 0.0
    %598 = vmatpush1.msra.mxu0 %v137
    %599 = vmatprep.subr.mxu0 0.0
    %600 = vmatpush1.msra.mxu0 %v140
    %601 = vmatprep.subr.mxu0 0.0
    %602 = vmatpush1.msra.mxu0 %v143
    %603 = vmatprep.subr.mxu0 0.0
    %604 = vmatpush1.msra.mxu0 %v146
    %605 = vmatprep.subr.mxu0 0.0
    %606 = vmatpush1.msra.mxu0 %v149
    %607 = vmatprep.subr.mxu0 0.0
    %608 = vmatpush1.msra.mxu0 %v152
    %609 = vmatprep.subr.mxu0 0.0
    %610 = vmatpush1.msra.mxu0 %v155
    %611 = vmatprep.subr.mxu0 0.0
    %612 = vmatpush1.msra.mxu0 %v158
    %613 = vmatprep.subr.mxu0 0.0
    %614 = vmatpush1.msra.mxu0 %v161
    %615 = vmatprep.subr.mxu0 0.0
    %616 = vmatpush1.msra.mxu0 %v164
    %617 = vmatprep.subr.mxu0 0.0
    %618 = vmatpush1.msra.mxu0 %v167
    %619 = vmatprep.subr.mxu0 0.0
    %620 = vmatpush1.msra.mxu0 %v170
    %621 = vmatprep.subr.mxu0 0.0
    %622 = vmatpush1.msra.mxu0 %v173
    %623 = vmatprep.subr.mxu0 0.0
    %624 = vmatpush1.msra.mxu0 %v176
    %625 = vmatprep.subr.mxu0 0.0
    %626 = vmatpush1.msra.mxu0 %v179
    %627 = vmatprep.subr.mxu0 0.0
    %628 = vmatpush1.msra.mxu0 %v182
    %629 = vmatprep.mubr.f32.mxu0 %v486
    %630 = vmatmul.mubr.f32.gmra.mrb[0].mxu0 %v486
    %v631 = vpop.f32.mrb[0].mxu0
    %v632 = vadd.f32 %v213, %v631
    %v633 = vpop.f32.mrb[0].mxu0
    %634 = vmatprep.mubr.f32.mxu0 %v487
    %635 = vmatmul.mubr.f32.gmra.mrb[0].mxu0 %v487
    %v636 = vpop.f32.mrb[0].mxu0
    %v637 = vadd.f32 %v213, %v636
    %v638 = vpop.f32.mrb[0].mxu0
    %639 = vdwg.mxu0
    %640 = vmatprep.subr.mxu0 0.0
    %641 = vmatpush1.msra.mxu0 %v184
    %642 = vmatprep.subr.mxu0 0.0
    %643 = vmatpush1.msra.mxu0 %v185
    %644 = vmatprep.subr.mxu0 0.0
    %645 = vmatpush1.msra.mxu0 %v186
    %646 = vmatprep.subr.mxu0 0.0
    %647 = vmatpush1.msra.mxu0 %v187
    %648 = vmatprep.subr.mxu0 0.0
    %649 = vmatpush1.msra.mxu0 %v188
    %650 = vmatprep.subr.mxu0 0.0
    %651 = vmatpush1.msra.mxu0 %v189
    %652 = vmatprep.subr.mxu0 0.0
    %653 = vmatpush1.msra.mxu0 %v190
    %654 = vmatprep.subr.mxu0 0.0
    %655 = vmatpush1.msra.mxu0 %v191
    %656 = vmatprep.subr.mxu0 0.0
    %657 = vmatpush1.msra.mxu0 %v192
    %658 = vmatprep.subr.mxu0 0.0
    %659 = vmatpush1.msra.mxu0 %v193
    %660 = vmatprep.subr.mxu0 0.0
    %661 = vmatpush1.msra.mxu0 %v194
    %662 = vmatprep.subr.mxu0 0.0
    %663 = vmatpush1.msra.mxu0 %v195
    %664 = vmatprep.subr.mxu0 0.0
    %665 = vmatpush1.msra.mxu0 %v196
    %666 = vmatprep.subr.mxu0 0.0
    %667 = vmatpush1.msra.mxu0 %v197
    %668 = vmatprep.subr.mxu0 0.0
    %669 = vmatpush1.msra.mxu0 %v198
    %670 = vmatprep.subr.mxu0 0.0
    %671 = vmatpush1.msra.mxu0 %v199
    %672 = vmatprep.subr.mxu0 0.0
    %673 = vmatpush1.msra.mxu0 0.0
    %674 = vmatprep.subr.mxu0 0.0
    %675 = vmatpush1.msra.mxu0 0.0
    %676 = vmatprep.subr.mxu0 0.0
    %677 = vmatpush1.msra.mxu0 0.0
    %678 = vmatprep.subr.mxu0 0.0
    %679 = vmatpush1.msra.mxu0 0.0
    %680 = vmatprep.subr.mxu0 0.0
    %681 = vmatpush1.msra.mxu0 0.0
    %682 = vmatprep.subr.mxu0 0.0
    %683 = vmatpush1.msra.mxu0 0.0
    %684 = vmatprep.subr.mxu0 0.0
    %685 = vmatpush1.msra.mxu0 0.0
    %686 = vmatprep.subr.mxu0 0.0
    %687 = vmatpush1.msra.mxu0 0.0
    %688 = vmatprep.subr.mxu0 0.0
    %689 = vmatpush1.msra.mxu0 0.0
    %690 = vmatprep.subr.mxu0 0.0
    %691 = vmatpush1.msra.mxu0 0.0
    %692 = vmatprep.subr.mxu0 0.0
    %693 = vmatpush1.msra.mxu0 0.0
    %694 = vmatprep.subr.mxu0 0.0
    %695 = vmatpush1.msra.mxu0 0.0
    %696 = vmatprep.subr.mxu0 0.0
    %697 = vmatpush1.msra.mxu0 0.0
    %698 = vmatprep.subr.mxu0 0.0
    %699 = vmatpush1.msra.mxu0 0.0
    %700 = vmatprep.subr.mxu0 0.0
    %701 = vmatpush1.msra.mxu0 0.0
    %702 = vmatprep.subr.mxu0 0.0
    %703 = vmatpush1.msra.mxu0 0.0
    %704 = vmatprep.mubr.f32.mxu0 0.0
    %705 = vmatmul.mubr.f32.gmra.mrb[0].mxu0 %v486
    %v706 = vpop.f32.mrb[0].mxu0
    %v707 = vadd.f32 %v373, %v706
    %v708 = vpop.f32.mrb[0].mxu0
    %709 = vmatprep.mubr.f32.mxu0 0.0
    %710 = vmatmul.mubr.f32.gmra.mrb[0].mxu0 %v487
    %v711 = vpop.f32.mrb[0].mxu0
    %v712 = vadd.f32 %v373, %v711
    %v713 = vpop.f32.mrb[0].mxu0
    %714 = vdwg.mxu0
    %v715 = vxor.u32 %v555, 2147483648
    %v716 = vxor.u32 %v561, 2147483648
    %v717 = vmul.f32 %v715, 1.442695
    %v718 = vpow.pop %v717
    %v719 = vmul.f32 %v716, 1.442695
    %v720 = vpow.pop %v719
    %v721 = vadd.f32 %v718, 1.0
    %v722 = vadd.f32 %v720, 1.0
    %v723 = vrcp.pop %v721
    %v724 = vmul.f32 1.0, %v723
    %v725 = vrcp.pop %v722
    %v726 = vmul.f32 1.0, %v725
    %v727 = vxor.u32 %v557, 2147483648
    %v728 = vxor.u32 %v563, 2147483648
    %v729 = vmul.f32 %v727, 1.442695
    %v730 = vpow.pop %v729
    %v731 = vmul.f32 %v728, 1.442695
    %v732 = vpow.pop %v731
    %v733 = vadd.f32 %v730, 1.0
    %v734 = vadd.f32 %v732, 1.0
    %v735 = vrcp.pop %v733
    %v736 = vmul.f32 1.0, %v735
    %v737 = vrcp.pop %v734
    %v738 = vmul.f32 1.0, %v737
    %v739 = vmul.f32 %v724, %v707
    %v740 = vmul.f32 %v726, %v712
    %v741 = vadd.f32 %v632, %v739
    %v742 = vadd.f32 %v637, %v740
    %v743 = vtanh.pop %v741
    %v744 = vtanh.pop %v742
    %v745 = vsub.f32 1.0, %v736
    %v746 = vsub.f32 1.0, %v738
    %v747 = vmul.f32 %v745, %v743
    %v748 = vmul.f32 %v746, %v744
    %v749 = vmul.f32 %v736, %v486
    %v750 = vmul.f32 %v738, %v487
    %v751 = vadd.f32 %v747, %v749
    %v752 = vadd.f32 %v748, %v750
    %753 = vmatprep.subr.mxu0 %v88
    %754 = vmatpush1.msra.mxu0 %v87
    %755 = vmatprep.subr.mxu0 %v91
    %756 = vmatpush1.msra.mxu0 %v90
    %757 = vmatprep.subr.mxu0 %v94
    %758 = vmatpush1.msra.mxu0 %v93
    %759 = vmatprep.subr.mxu0 %v97
    %760 = vmatpush1.msra.mxu0 %v96
    %761 = vmatprep.subr.mxu0 %v100
    %762 = vmatpush1.msra.mxu0 %v99
    %763 = vmatprep.subr.mxu0 %v103
    %764 = vmatpush1.msra.mxu0 %v102
    %765 = vmatprep.subr.mxu0 %v106
    %766 = vmatpush1.msra.mxu0 %v105
    %767 = vmatprep.subr.mxu0 %v109
    %768 = vmatpush1.msra.mxu0 %v108
    %769 = vmatprep.subr.mxu0 %v112
    %770 = vmatpush1.msra.mxu0 %v111
    %771 = vmatprep.subr.mxu0 %v115
    %772 = vmatpush1.msra.mxu0 %v114
    %773 = vmatprep.subr.mxu0 %v118
    %774 = vmatpush1.msra.mxu0 %v117
    %775 = vmatprep.subr.mxu0 %v121
    %776 = vmatpush1.msra.mxu0 %v120
    %777 = vmatprep.subr.mxu0 %v124
    %778 = vmatpush1.msra.mxu0 %v123
    %779 = vmatprep.subr.mxu0 %v127
    %780 = vmatpush1.msra.mxu0 %v126
    %781 = vmatprep.subr.mxu0 %v130
    %782 = vmatpush1.msra.mxu0 %v129
    %783 = vmatprep.subr.mxu0 %v133
    %784 = vmatpush1.msra.mxu0 %v132
    %785 = vmatprep.subr.mxu0 %v136
    %786 = vmatpush1.msra.mxu0 %v135
    %787 = vmatprep.subr.mxu0 %v139
    %788 = vmatpush1.msra.mxu0 %v138
    %789 = vmatprep.subr.mxu0 %v142
    %790 = vmatpush1.msra.mxu0 %v141
    %791 = vmatprep.subr.mxu0 %v145
    %792 = vmatpush1.msra.mxu0 %v144
    %793 = vmatprep.subr.mxu0 %v148
    %794 = vmatpush1.msra.mxu0 %v147
    %795 = vmatprep.subr.mxu0 %v151
    %796 = vmatpush1.msra.mxu0 %v150
    %797 = vmatprep.subr.mxu0 %v154
    %798 = vmatpush1.msra.mxu0 %v153
    %799 = vmatprep.subr.mxu0 %v157
    %800 = vmatpush1.msra.mxu0 %v156
    %801 = vmatprep.subr.mxu0 %v160
    %802 = vmatpush1.msra.mxu0 %v159
    %803 = vmatprep.subr.mxu0 %v163
    %804 = vmatpush1.msra.mxu0 %v162
    %805 = vmatprep.subr.mxu0 %v166
    %806 = vmatpush1.msra.mxu0 %v165
    %807 = vmatprep.subr.mxu0 %v169
    %808 = vmatpush1.msra.mxu0 %v168
    %809 = vmatprep.subr.mxu0 %v172
    %810 = vmatpush1.msra.mxu0 %v171
    %811 = vmatprep.subr.mxu0 %v175
    %812 = vmatpush1.msra.mxu0 %v174
    %813 = vmatprep.subr.mxu0 %v178
    %814 = vmatpush1.msra.mxu0 %v177
    %815 = vmatprep.subr.mxu0 %v181
    %816 = vmatpush1.msra.mxu0 %v180
    %817 = vmatprep.mubr.f32.mxu0 %v751
    %818 = vmatmul.mubr.f32.gmra.mrb[0].mxu0 %v751
    %v819 = vpop.f32.mrb[0].mxu0
    %v820 = vadd.f32 %v205, %v819
    %v821 = vpop.f32.mrb[0].mxu0
    %v822 = vadd.f32 %v209, %v821
    %823 = vmatprep.mubr.f32.mxu0 %v752
    %824 = vmatmul.mubr.f32.gmra.mrb[0].mxu0 %v752
    %v825 = vpop.f32.mrb[0].mxu0
    %v826 = vadd.f32 %v205, %v825
    %v827 = vpop.f32.mrb[0].mxu0
    %v828 = vadd.f32 %v209, %v827
    %829 = vdwg.mxu0
    %830 = vmatprep.subr.mxu0 0.0
    %831 = vmatpush1.msra.mxu0 %v89
    %832 = vmatprep.subr.mxu0 0.0
    %833 = vmatpush1.msra.mxu0 %v92
    %834 = vmatprep.subr.mxu0 0.0
    %835 = vmatpush1.msra.mxu0 %v95
    %836 = vmatprep.subr.mxu0 0.0
    %837 = vmatpush1.msra.mxu0 %v98
    %838 = vmatprep.subr.mxu0 0.0
    %839 = vmatpush1.msra.mxu0 %v101
    %840 = vmatprep.subr.mxu0 0.0
    %841 = vmatpush1.msra.mxu0 %v104
    %842 = vmatprep.subr.mxu0 0.0
    %843 = vmatpush1.msra.mxu0 %v107
    %844 = vmatprep.subr.mxu0 0.0
    %845 = vmatpush1.msra.mxu0 %v110
    %846 = vmatprep.subr.mxu0 0.0
    %847 = vmatpush1.msra.mxu0 %v113
    %848 = vmatprep.subr.mxu0 0.0
    %849 = vmatpush1.msra.mxu0 %v116
    %850 = vmatprep.subr.mxu0 0.0
    %851 = vmatpush1.msra.mxu0 %v119
    %852 = vmatprep.subr.mxu0 0.0
    %853 = vmatpush1.msra.mxu0 %v122
    %854 = vmatprep.subr.mxu0 0.0
    %855 = vmatpush1.msra.mxu0 %v125
    %856 = vmatprep.subr.mxu0 0.0
    %857 = vmatpush1.msra.mxu0 %v128
    %858 = vmatprep.subr.mxu0 0.0
    %859 = vmatpush1.msra.mxu0 %v131
    %860 = vmatprep.subr.mxu0 0.0
    %861 = vmatpush1.msra.mxu0 %v134
    %862 = vmatprep.subr.mxu0 0.0
    %863 = vmatpush1.msra.mxu0 %v137
    %864 = vmatprep.subr.mxu0 0.0
    %865 = vmatpush1.msra.mxu0 %v140
    %866 = vmatprep.subr.mxu0 0.0
    %867 = vmatpush1.msra.mxu0 %v143
    %868 = vmatprep.subr.mxu0 0.0
    %869 = vmatpush1.msra.mxu0 %v146
    %870 = vmatprep.subr.mxu0 0.0
    %871 = vmatpush1.msra.mxu0 %v149
    %872 = vmatprep.subr.mxu0 0.0
    %873 = vmatpush1.msra.mxu0 %v152
    %874 = vmatprep.subr.mxu0 0.0
    %875 = vmatpush1.msra.mxu0 %v155
    %876 = vmatprep.subr.mxu0 0.0
    %877 = vmatpush1.msra.mxu0 %v158
    %878 = vmatprep.subr.mxu0 0.0
    %879 = vmatpush1.msra.mxu0 %v161
    %880 = vmatprep.subr.mxu0 0.0
    %881 = vmatpush1.msra.mxu0 %v164
    %882 = vmatprep.subr.mxu0 0.0
    %883 = vmatpush1.msra.mxu0 %v167
    %884 = vmatprep.subr.mxu0 0.0
    %885 = vmatpush1.msra.mxu0 %v170
    %886 = vmatprep.subr.mxu0 0.0
    %887 = vmatpush1.msra.mxu0 %v173
    %888 = vmatprep.subr.mxu0 0.0
    %889 = vmatpush1.msra.mxu0 %v176
    %890 = vmatprep.subr.mxu0 0.0
    %891 = vmatpush1.msra.mxu0 %v179
    %892 = vmatprep.subr.mxu0 0.0
    %893 = vmatpush1.msra.mxu0 %v182
    %894 = vmatprep.mubr.f32.mxu0 %v751
    %895 = vmatmul.mubr.f32.gmra.mrb[0].mxu0 %v751
    %v896 = vpop.f32.mrb[0].mxu0
    %v897 = vadd.f32 %v213, %v896
    %v898 = vpop.f32.mrb[0].mxu0
    %899 = vmatprep.mubr.f32.mxu0 %v752
    %900 = vmatmul.mubr.f32.gmra.mrb[0].mxu0 %v752
    %v901 = vpop.f32.mrb[0].mxu0
    %v902 = vadd.f32 %v213, %v901
    %v903 = vpop.f32.mrb[0].mxu0
    %904 = vdwg.mxu0
    %905 = vmatprep.subr.mxu0 0.0
    %906 = vmatpush1.msra.mxu0 %v184
    %907 = vmatprep.subr.mxu0 0.0
    %908 = vmatpush1.msra.mxu0 %v185
    %909 = vmatprep.subr.mxu0 0.0
    %910 = vmatpush1.msra.mxu0 %v186
    %911 = vmatprep.subr.mxu0 0.0
    %912 = vmatpush1.msra.mxu0 %v187
    %913 = vmatprep.subr.mxu0 0.0
    %914 = vmatpush1.msra.mxu0 %v188
    %915 = vmatprep.subr.mxu0 0.0
    %916 = vmatpush1.msra.mxu0 %v189
    %917 = vmatprep.subr.mxu0 0.0
    %918 = vmatpush1.msra.mxu0 %v190
    %919 = vmatprep.subr.mxu0 0.0
    %920 = vmatpush1.msra.mxu0 %v191
    %921 = vmatprep.subr.mxu0 0.0
    %922 = vmatpush1.msra.mxu0 %v192
    %923 = vmatprep.subr.mxu0 0.0
    %924 = vmatpush1.msra.mxu0 %v193
    %925 = vmatprep.subr.mxu0 0.0
    %926 = vmatpush1.msra.mxu0 %v194
    %927 = vmatprep.subr.mxu0 0.0
    %928 = vmatpush1.msra.mxu0 %v195
    %929 = vmatprep.subr.mxu0 0.0
    %930 = vmatpush1.msra.mxu0 %v196
    %931 = vmatprep.subr.mxu0 0.0
    %932 = vmatpush1.msra.mxu0 %v197
    %933 = vmatprep.subr.mxu0 0.0
    %934 = vmatpush1.msra.mxu0 %v198
    %935 = vmatprep.subr.mxu0 0.0
    %936 = vmatpush1.msra.mxu0 %v199
    %937 = vmatprep.subr.mxu0 0.0
    %938 = vmatpush1.msra.mxu0 0.0
    %939 = vmatprep.subr.mxu0 0.0
    %940 = vmatpush1.msra.mxu0 0.0
    %941 = vmatprep.subr.mxu0 0.0
    %942 = vmatpush1.msra.mxu0 0.0
    %943 = vmatprep.subr.mxu0 0.0
    %944 = vmatpush1.msra.mxu0 0.0
    %945 = vmatprep.subr.mxu0 0.0
    %946 = vmatpush1.msra.mxu0 0.0
    %947 = vmatprep.subr.mxu0 0.0
    %948 = vmatpush1.msra.mxu0 0.0
    %949 = vmatprep.subr.mxu0 0.0
    %950 = vmatpush1.msra.mxu0 0.0
    %951 = vmatprep.subr.mxu0 0.0
    %952 = vmatpush1.msra.mxu0 0.0
    %953 = vmatprep.subr.mxu0 0.0
    %954 = vmatpush1.msra.mxu0 0.0
    %955 = vmatprep.subr.mxu0 0.0
    %956 = vmatpush1.msra.mxu0 0.0
    %957 = vmatprep.subr.mxu0 0.0
    %958 = vmatpush1.msra.mxu0 0.0
    %959 = vmatprep.subr.mxu0 0.0
    %960 = vmatpush1.msra.mxu0 0.0
    %961 = vmatprep.subr.mxu0 0.0
    %962 = vmatpush1.msra.mxu0 0.0
    %963 = vmatprep.subr.mxu0 0.0
    %964 = vmatpush1.msra.mxu0 0.0
    %965 = vmatprep.subr.mxu0 0.0
    %966 = vmatpush1.msra.mxu0 0.0
    %967 = vmatprep.subr.mxu0 0.0
    %968 = vmatpush1.msra.mxu0 0.0
    %969 = vmatprep.mubr.f32.mxu0 0.0
    %970 = vmatmul.mubr.f32.gmra.mrb[0].mxu0 %v751
    %v971 = vpop.f32.mrb[0].mxu0
    %v972 = vadd.f32 %v373, %v971
    %v973 = vpop.f32.mrb[0].mxu0
    %974 = vmatprep.mubr.f32.mxu0 0.0
    %975 = vmatmul.mubr.f32.gmra.mrb[0].mxu0 %v752
    %v976 = vpop.f32.mrb[0].mxu0
    %v977 = vadd.f32 %v373, %v976
    %v978 = vpop.f32.mrb[0].mxu0
    %979 = vdwg.mxu0
    %v980 = vxor.u32 %v820, 2147483648
    %v981 = vxor.u32 %v826, 2147483648
    %v982 = vmul.f32 %v980, 1.442695
    %v983 = vpow.pop %v982
    %v984 = vmul.f32 %v981, 1.442695
    %v985 = vpow.pop %v984
    %v986 = vadd.f32 %v983, 1.0
    %v987 = vadd.f32 %v985, 1.0
    %v988 = vrcp.pop %v986
    %v989 = vmul.f32 1.0, %v988
    %v990 = vrcp.pop %v987
    %v991 = vmul.f32 1.0, %v990
    %v992 = vxor.u32 %v822, 2147483648
    %v993 = vxor.u32 %v828, 2147483648
    %v994 = vmul.f32 %v992, 1.442695
    %v995 = vpow.pop %v994
    %v996 = vmul.f32 %v993, 1.442695
    %v997 = vpow.pop %v996
    %v998 = vadd.f32 %v995, 1.0
    %v999 = vadd.f32 %v997, 1.0
    %v1000 = vrcp.pop %v998
    %v1001 = vmul.f32 1.0, %v1000
    %v1002 = vrcp.pop %v999
    %v1003 = vmul.f32 1.0, %v1002
    %v1004 = vmul.f32 %v989, %v972
    %v1005 = vmul.f32 %v991, %v977
    %v1006 = vadd.f32 %v897, %v1004
    %v1007 = vadd.f32 %v902, %v1005
    %v1008 = vtanh.pop %v1006
    %v1009 = vtanh.pop %v1007
    %v1010 = vsub.f32 1.0, %v1001
    %v1011 = vsub.f32 1.0, %v1003
    %v1012 = vmul.f32 %v1010, %v1008
    %v1013 = vmul.f32 %v1011, %v1009
    %v1014 = vmul.f32 %v1001, %v751
    %v1015 = vmul.f32 %v1003, %v752
    %v1016 = vadd.f32 %v1012, %v1014
    %v1017 = vadd.f32 %v1013, %v1015
    %1018 = vmatprep.subr.mxu0 %v88
    %1019 = vmatpush1.msra.mxu0 %v87
    %1020 = vmatprep.subr.mxu0 %v91
    %1021 = vmatpush1.msra.mxu0 %v90
    %1022 = vmatprep.subr.mxu0 %v94
    %1023 = vmatpush1.msra.mxu0 %v93
    %1024 = vmatprep.subr.mxu0 %v97
    %1025 = vmatpush1.msra.mxu0 %v96
    %1026 = vmatprep.subr.mxu0 %v100
    %1027 = vmatpush1.msra.mxu0 %v99
    %1028 = vmatprep.subr.mxu0 %v103
    %1029 = vmatpush1.msra.mxu0 %v102
    %1030 = vmatprep.subr.mxu0 %v106
    %1031 = vmatpush1.msra.mxu0 %v105
    %1032 = vmatprep.subr.mxu0 %v109
    %1033 = vmatpush1.msra.mxu0 %v108
    %1034 = vmatprep.subr.mxu0 %v112
    %1035 = vmatpush1.msra.mxu0 %v111
    %1036 = vmatprep.subr.mxu0 %v115
    %1037 = vmatpush1.msra.mxu0 %v114
    %1038 = vmatprep.subr.mxu0 %v118
    %1039 = vmatpush1.msra.mxu0 %v117
    %1040 = vmatprep.subr.mxu0 %v121
    %1041 = vmatpush1.msra.mxu0 %v120
    %1042 = vmatprep.subr.mxu0 %v124
    %1043 = vmatpush1.msra.mxu0 %v123
    %1044 = vmatprep.subr.mxu0 %v127
    %1045 = vmatpush1.msra.mxu0 %v126
    %1046 = vmatprep.subr.mxu0 %v130
    %1047 = vmatpush1.msra.mxu0 %v129
    %1048 = vmatprep.subr.mxu0 %v133
    %1049 = vmatpush1.msra.mxu0 %v132
    %1050 = vmatprep.subr.mxu0 %v136
    %1051 = vmatpush1.msra.mxu0 %v135
    %1052 = vmatprep.subr.mxu0 %v139
    %1053 = vmatpush1.msra.mxu0 %v138
    %1054 = vmatprep.subr.mxu0 %v142
    %1055 = vmatpush1.msra.mxu0 %v141
    %1056 = vmatprep.subr.mxu0 %v145
    %1057 = vmatpush1.msra.mxu0 %v144
    %1058 = vmatprep.subr.mxu0 %v148
    %1059 = vmatpush1.msra.mxu0 %v147
    %1060 = vmatprep.subr.mxu0 %v151
    %1061 = vmatpush1.msra.mxu0 %v150
    %1062 = vmatprep.subr.mxu0 %v154
    %1063 = vmatpush1.msra.mxu0 %v153
    %1064 = vmatprep.subr.mxu0 %v157
    %1065 = vmatpush1.msra.mxu0 %v156
    %1066 = vmatprep.subr.mxu0 %v160
    %1067 = vmatpush1.msra.mxu0 %v159
    %1068 = vmatprep.subr.mxu0 %v163
    %1069 = vmatpush1.msra.mxu0 %v162
    %1070 = vmatprep.subr.mxu0 %v166
    %1071 = vmatpush1.msra.mxu0 %v165
    %1072 = vmatprep.subr.mxu0 %v169
    %1073 = vmatpush1.msra.mxu0 %v168
    %1074 = vmatprep.subr.mxu0 %v172
    %1075 = vmatpush1.msra.mxu0 %v171
    %1076 = vmatprep.subr.mxu0 %v175
    %1077 = vmatpush1.msra.mxu0 %v174
    %1078 = vmatprep.subr.mxu0 %v178
    %1079 = vmatpush1.msra.mxu0 %v177
    %1080 = vmatprep.subr.mxu0 %v181
    %1081 = vmatpush1.msra.mxu0 %v180
    %1082 = vmatprep.mubr.f32.mxu0 %v1016
    %1083 = vmatmul.mubr.f32.gmra.mrb[0].mxu0 %v1016
    %v1084 = vpop.f32.mrb[0].mxu0
    %v1085 = vadd.f32 %v205, %v1084
    %v1086 = vpop.f32.mrb[0].mxu0
    %v1087 = vadd.f32 %v209, %v1086
    %1088 = vmatprep.mubr.f32.mxu0 %v1017
    %1089 = vmatmul.mubr.f32.gmra.mrb[0].mxu0 %v1017
    %v1090 = vpop.f32.mrb[0].mxu0
    %v1091 = vadd.f32 %v205, %v1090
    %v1092 = vpop.f32.mrb[0].mxu0
    %v1093 = vadd.f32 %v209, %v1092
    %1094 = vdwg.mxu0
    %1095 = vmatprep.subr.mxu0 0.0
    %1096 = vmatpush1.msra.mxu0 %v89
    %1097 = vmatprep.subr.mxu0 0.0
    %1098 = vmatpush1.msra.mxu0 %v92
    %1099 = vmatprep.subr.mxu0 0.0
    %1100 = vmatpush1.msra.mxu0 %v95
    %1101 = vmatprep.subr.mxu0 0.0
    %1102 = vmatpush1.msra.mxu0 %v98
    %1103 = vmatprep.subr.mxu0 0.0
    %1104 = vmatpush1.msra.mxu0 %v101
    %1105 = vmatprep.subr.mxu0 0.0
    %1106 = vmatpush1.msra.mxu0 %v104
    %1107 = vmatprep.subr.mxu0 0.0
    %1108 = vmatpush1.msra.mxu0 %v107
    %1109 = vmatprep.subr.mxu0 0.0
    %1110 = vmatpush1.msra.mxu0 %v110
    %1111 = vmatprep.subr.mxu0 0.0
    %1112 = vmatpush1.msra.mxu0 %v113
    %1113 = vmatprep.subr.mxu0 0.0
    %1114 = vmatpush1.msra.mxu0 %v116
    %1115 = vmatprep.subr.mxu0 0.0
    %1116 = vmatpush1.msra.mxu0 %v119
    %1117 = vmatprep.subr.mxu0 0.0
    %1118 = vmatpush1.msra.mxu0 %v122
    %1119 = vmatprep.subr.mxu0 0.0
    %1120 = vmatpush1.msra.mxu0 %v125
    %1121 = vmatprep.subr.mxu0 0.0
    %1122 = vmatpush1.msra.mxu0 %v128
    %1123 = vmatprep.subr.mxu0 0.0
    %1124 = vmatpush1.msra.mxu0 %v131
    %1125 = vmatprep.subr.mxu0 0.0
    %1126 = vmatpush1.msra.mxu0 %v134
    %1127 = vmatprep.subr.mxu0 0.0
    %1128 = vmatpush1.msra.mxu0 %v137
    %1129 = vmatprep.subr.mxu0 0.0
    %1130 = vmatpush1.msra.mxu0 %v140
    %1131 = vmatprep.subr.mxu0 0.0
    %1132 = vmatpush1.msra.mxu0 %v143
    %1133 = vmatprep.subr.mxu0 0.0
    %1134 = vmatpush1.msra.mxu0 %v146
    %1135 = vmatprep.subr.mxu0 0.0
    %1136 = vmatpush1.msra.mxu0 %v149
    %1137 = vmatprep.subr.mxu0 0.0
    %1138 = vmatpush1.msra.mxu0 %v152
    %1139 = vmatprep.subr.mxu0 0.0
    %1140 = vmatpush1.msra.mxu0 %v155
    %1141 = vmatprep.subr.mxu0 0.0
    %1142 = vmatpush1.msra.mxu0 %v158
    %1143 = vmatprep.subr.mxu0 0.0
    %1144 = vmatpush1.msra.mxu0 %v161
    %1145 = vmatprep.subr.mxu0 0.0
    %1146 = vmatpush1.msra.mxu0 %v164
    %1147 = vmatprep.subr.mxu0 0.0
    %1148 = vmatpush1.msra.mxu0 %v167
    %1149 = vmatprep.subr.mxu0 0.0
    %1150 = vmatpush1.msra.mxu0 %v170
    %1151 = vmatprep.subr.mxu0 0.0
    %1152 = vmatpush1.msra.mxu0 %v173
    %1153 = vmatprep.subr.mxu0 0.0
    %1154 = vmatpush1.msra.mxu0 %v176
    %1155 = vmatprep.subr.mxu0 0.0
    %1156 = vmatpush1.msra.mxu0 %v179
    %1157 = vmatprep.subr.mxu0 0.0
    %1158 = vmatpush1.msra.mxu0 %v182
    %1159 = vmatprep.mubr.f32.mxu0 %v1016
    %1160 = vmatmul.mubr.f32.gmra.mrb[0].mxu0 %v1016
    %v1161 = vpop.f32.mrb[0].mxu0
    %v1162 = vadd.f32 %v213, %v1161
    %v1163 = vpop.f32.mrb[0].mxu0
    %1164 = vmatprep.mubr.f32.mxu0 %v1017
    %1165 = vmatmul.mubr.f32.gmra.mrb[0].mxu0 %v1017
    %v1166 = vpop.f32.mrb[0].mxu0
    %v1167 = vadd.f32 %v213, %v1166
    %v1168 = vpop.f32.mrb[0].mxu0
    %1169 = vdwg.mxu0
    %1170 = vmatprep.subr.mxu0 0.0
    %1171 = vmatpush1.msra.mxu0 %v184
    %1172 = vmatprep.subr.mxu0 0.0
    %1173 = vmatpush1.msra.mxu0 %v185
    %1174 = vmatprep.subr.mxu0 0.0
    %1175 = vmatpush1.msra.mxu0 %v186
    %1176 = vmatprep.subr.mxu0 0.0
    %1177 = vmatpush1.msra.mxu0 %v187
    %1178 = vmatprep.subr.mxu0 0.0
    %1179 = vmatpush1.msra.mxu0 %v188
    %1180 = vmatprep.subr.mxu0 0.0
    %1181 = vmatpush1.msra.mxu0 %v189
    %1182 = vmatprep.subr.mxu0 0.0
    %1183 = vmatpush1.msra.mxu0 %v190
    %1184 = vmatprep.subr.mxu0 0.0
    %1185 = vmatpush1.msra.mxu0 %v191
    %1186 = vmatprep.subr.mxu0 0.0
    %1187 = vmatpush1.msra.mxu0 %v192
    %1188 = vmatprep.subr.mxu0 0.0
    %1189 = vmatpush1.msra.mxu0 %v193
    %1190 = vmatprep.subr.mxu0 0.0
    %1191 = vmatpush1.msra.mxu0 %v194
    %1192 = vmatprep.subr.mxu0 0.0
    %1193 = vmatpush1.msra.mxu0 %v195
    %1194 = vmatprep.subr.mxu0 0.0
    %1195 = vmatpush1.msra.mxu0 %v196
    %1196 = vmatprep.subr.mxu0 0.0
    %1197 = vmatpush1.msra.mxu0 %v197
    %1198 = vmatprep.subr.mxu0 0.0
    %1199 = vmatpush1.msra.mxu0 %v198
    %1200 = vmatprep.subr.mxu0 0.0
    %1201 = vmatpush1.msra.mxu0 %v199
    %1202 = vmatprep.subr.mxu0 0.0
    %1203 = vmatpush1.msra.mxu0 0.0
    %1204 = vmatprep.subr.mxu0 0.0
    %1205 = vmatpush1.msra.mxu0 0.0
    %1206 = vmatprep.subr.mxu0 0.0
    %1207 = vmatpush1.msra.mxu0 0.0
    %1208 = vmatprep.subr.mxu0 0.0
    %1209 = vmatpush1.msra.mxu0 0.0
    %1210 = vmatprep.subr.mxu0 0.0
    %1211 = vmatpush1.msra.mxu0 0.0
    %1212 = vmatprep.subr.mxu0 0.0
    %1213 = vmatpush1.msra.mxu0 0.0
    %1214 = vmatprep.subr.mxu0 0.0
    %1215 = vmatpush1.msra.mxu0 0.0
    %1216 = vmatprep.subr.mxu0 0.0
    %1217 = vmatpush1.msra.mxu0 0.0
    %1218 = vmatprep.subr.mxu0 0.0
    %1219 = vmatpush1.msra.mxu0 0.0
    %1220 = vmatprep.subr.mxu0 0.0
    %1221 = vmatpush1.msra.mxu0 0.0
    %1222 = vmatprep.subr.mxu0 0.0
    %1223 = vmatpush1.msra.mxu0 0.0
    %1224 = vmatprep.subr.mxu0 0.0
    %1225 = vmatpush1.msra.mxu0 0.0
    %1226 = vmatprep.subr.mxu0 0.0
    %1227 = vmatpush1.msra.mxu0 0.0
    %1228 = vmatprep.subr.mxu0 0.0
    %1229 = vmatpush1.msra.mxu0 0.0
    %1230 = vmatprep.subr.mxu0 0.0
    %1231 = vmatpush1.msra.mxu0 0.0
    %1232 = vmatprep.subr.mxu0 0.0
    %1233 = vmatpush1.msra.mxu0 0.0
    %1234 = vmatprep.mubr.f32.mxu0 0.0
    %1235 = vmatmul.mubr.f32.gmra.mrb[0].mxu0 %v1016
    %v1236 = vpop.f32.mrb[0].mxu0
    %v1237 = vadd.f32 %v373, %v1236
    %v1238 = vpop.f32.mrb[0].mxu0
    %1239 = vmatprep.mubr.f32.mxu0 0.0
    %1240 = vmatmul.mubr.f32.gmra.mrb[0].mxu0 %v1017
    %v1241 = vpop.f32.mrb[0].mxu0
    %v1242 = vadd.f32 %v373, %v1241
    %v1243 = vpop.f32.mrb[0].mxu0
    %1244 = vdwg.mxu0
    %v1245 = vxor.u32 %v1085, 2147483648
    %v1246 = vxor.u32 %v1091, 2147483648
    %v1247 = vmul.f32 %v1245, 1.442695
    %v1248 = vpow.pop %v1247
    %v1249 = vmul.f32 %v1246, 1.442695
    %v1250 = vpow.pop %v1249
    %v1251 = vadd.f32 %v1248, 1.0
    %v1252 = vadd.f32 %v1250, 1.0
    %v1253 = vrcp.pop %v1251
    %v1254 = vmul.f32 1.0, %v1253
    %v1255 = vrcp.pop %v1252
    %v1256 = vmul.f32 1.0, %v1255
    %v1257 = vxor.u32 %v1087, 2147483648
    %v1258 = vxor.u32 %v1093, 2147483648
    %v1259 = vmul.f32 %v1257, 1.442695
    %v1260 = vpow.pop %v1259
    %v1261 = vmul.f32 %v1258, 1.442695
    %v1262 = vpow.pop %v1261
    %v1263 = vadd.f32 %v1260, 1.0
    %v1264 = vadd.f32 %v1262, 1.0
    %v1265 = vrcp.pop %v1263
    %v1266 = vmul.f32 1.0, %v1265
    %v1267 = vrcp.pop %v1264
    %v1268 = vmul.f32 1.0, %v1267
    %v1269 = vmul.f32 %v1254, %v1237
    %v1270 = vmul.f32 %v1256, %v1242
    %v1271 = vadd.f32 %v1162, %v1269
    %v1272 = vadd.f32 %v1167, %v1270
    %v1273 = vtanh.pop %v1271
    %v1274 = vtanh.pop %v1272
    %v1275 = vsub.f32 1.0, %v1266
    %v1276 = vsub.f32 1.0, %v1268
    %v1277 = vmul.f32 %v1275, %v1273
    %v1278 = vmul.f32 %v1276, %v1274
    %v1279 = vmul.f32 %v1266, %v1016
    %v1280 = vmul.f32 %v1268, %v1017
    %v1281 = vadd.f32 %v1277, %v1279
    %v1282 = vadd.f32 %v1278, %v1280
    %1283 = vst [vmem:[#allocation10] sm:$0xff] %v1281
    %1284 = vst [vmem:[#allocation10 + $0x8] sm:$0xff] %v1282
    %v1285 = vld [vmem:[#allocation8] sm:$0xff]
    %v1286 = vld [vmem:[#allocation8 + $0x8] sm:$0xff]
    %v1287 = vld [vmem:[#allocation8 + $0x10] sm:$0xff]
    %v1288 = vld [vmem:[#allocation8 + $0x18] sm:$0xff]
    %v1289 = vld [vmem:[#allocation8 + $0x20] sm:$0xff]
    %v1290 = vld [vmem:[#allocation8 + $0x28] sm:$0xff]
    %v1291 = vld [vmem:[#allocation8 + $0x30] sm:$0xff]
    %v1292 = vld [vmem:[#allocation8 + $0x38] sm:$0xff]
    %v1293 = vld [vmem:[#allocation8 + $0x40] sm:$0xff]
    %v1294 = vld [vmem:[#allocation8 + $0x48] sm:$0xff]
    %v1295 = vld [vmem:[#allocation8 + $0x50] sm:$0xff]
    %v1296 = vld [vmem:[#allocation8 + $0x58] sm:$0xff]
    %v1297 = vld [vmem:[#allocation8 + $0x60] sm:$0xff]
    %v1298 = vld [vmem:[#allocation8 + $0x68] sm:$0xff]
    %v1299 = vld [vmem:[#allocation8 + $0x70] sm:$0xff]
    %v1300 = vld [vmem:[#allocation8 + $0x78] sm:$0xff]
    %1301 = vmatprep.subr.mxu0 0.0
    %1302 = vmatpush1.msra.mxu0 %v1285
    %1303 = vmatprep.subr.mxu0 0.0
    %1304 = vmatpush1.msra.mxu0 %v1286
    %1305 = vmatprep.subr.mxu0 0.0
    %1306 = vmatpush1.msra.mxu0 %v1287
    %1307 = vmatprep.subr.mxu0 0.0
    %1308 = vmatpush1.msra.mxu0 %v1288
    %1309 = vmatprep.subr.mxu0 0.0
    %1310 = vmatpush1.msra.mxu0 %v1289
    %1311 = vmatprep.subr.mxu0 0.0
    %1312 = vmatpush1.msra.mxu0 %v1290
    %1313 = vmatprep.subr.mxu0 0.0
    %1314 = vmatpush1.msra.mxu0 %v1291
    %1315 = vmatprep.subr.mxu0 0.0
    %1316 = vmatpush1.msra.mxu0 %v1292
    %1317 = vmatprep.subr.mxu0 0.0
    %1318 = vmatpush1.msra.mxu0 %v1293
    %1319 = vmatprep.subr.mxu0 0.0
    %1320 = vmatpush1.msra.mxu0 %v1294
    %1321 = vmatprep.subr.mxu0 0.0
    %1322 = vmatpush1.msra.mxu0 %v1295
    %1323 = vmatprep.subr.mxu0 0.0
    %1324 = vmatpush1.msra.mxu0 %v1296
    %1325 = vmatprep.subr.mxu0 0.0
    %1326 = vmatpush1.msra.mxu0 %v1297
    %1327 = vmatprep.subr.mxu0 0.0
    %1328 = vmatpush1.msra.mxu0 %v1298
    %1329 = vmatprep.subr.mxu0 0.0
    %1330 = vmatpush1.msra.mxu0 %v1299
    %1331 = vmatprep.subr.mxu0 0.0
    %1332 = vmatpush1.msra.mxu0 %v1300
    %1333 = vmatprep.subr.mxu0 0.0
    %1334 = vmatpush1.msra.mxu0 0.0
    %1335 = vmatprep.subr.mxu0 0.0
    %1336 = vmatpush1.msra.mxu0 0.0
    %1337 = vmatprep.subr.mxu0 0.0
    %1338 = vmatpush1.msra.mxu0 0.0
    %1339 = vmatprep.subr.mxu0 0.0
    %1340 = vmatpush1.msra.mxu0 0.0
    %1341 = vmatprep.subr.mxu0 0.0
    %1342 = vmatpush1.msra.mxu0 0.0
    %1343 = vmatprep.subr.mxu0 0.0
    %1344 = vmatpush1.msra.mxu0 0.0
    %1345 = vmatprep.subr.mxu0 0.0
    %1346 = vmatpush1.msra.mxu0 0.0
    %1347 = vmatprep.subr.mxu0 0.0
    %1348 = vmatpush1.msra.mxu0 0.0
    %1349 = vmatprep.subr.mxu0 0.0
    %1350 = vmatpush1.msra.mxu0 0.0
    %1351 = vmatprep.subr.mxu0 0.0
    %1352 = vmatpush1.msra.mxu0 0.0
    %1353 = vmatprep.subr.mxu0 0.0
    %1354 = vmatpush1.msra.mxu0 0.0
    %1355 = vmatprep.subr.mxu0 0.0
    %1356 = vmatpush1.msra.mxu0 0.0
    %1357 = vmatprep.subr.mxu0 0.0
    %1358 = vmatpush1.msra.mxu0 0.0
    %1359 = vmatprep.subr.mxu0 0.0
    %1360 = vmatpush1.msra.mxu0 0.0
    %1361 = vmatprep.subr.mxu0 0.0
    %1362 = vmatpush1.msra.mxu0 0.0
    %1363 = vmatprep.subr.mxu0 0.0
    %1364 = vmatpush1.msra.mxu0 0.0
    %1365 = vmatprep.mubr.f32.mxu0 0.0
    %1366 = vmatmul.mubr.f32.gmra.mrb[0].mxu0 %v1281
    %v1367 = vpop.f32.mrb[0].mxu0
    %v1368 = vadd.f32 0.0, %v1367
    %v1369 = vpop.f32.mrb[0].mxu0
    %1370 = vmatprep.mubr.f32.mxu0 0.0
    %1371 = vmatmul.mubr.f32.gmra.mrb[0].mxu0 %v1282
    %v1372 = vpop.f32.mrb[0].mxu0
    %v1373 = vadd.f32 0.0, %v1372
    %v1374 = vpop.f32.mrb[0].mxu0
    %1375 = vdwg.mxu0
    %1376 = vst [vmem:[#allocation11] sm:$0xff] %v1368
    %1377 = vst [vmem:[#allocation11 + $0x8] sm:$0xff] %v1373
    // Predicated region
    $region42: #{tpu_custom_call.1} parent=1 // pred_check
      _
    $region43: #{tpu_custom_call.1} parent=1 // pred_check_branch
      %1379 = sbr.rel (0) target = $region45
    $region44: #{tpu_custom_call.1} parent=1 // pred_region
      %s1381 = ssub.s32 256, 256
      %1382 = vsyncadd [#allocation4], %s1381
      %s1383 = sshll.u32 [#allocation10], 4
      %s1384 = int_to_ptr.vmem [resolvable:$true] %s1383
      %1389 = dma.vmem_to_hbm [thread:$0]  %s1384, 256, %s6, [#allocation4], 128, 128, 8
    $region45: #{tpu_custom_call.1} parent=1 // pred_fallthru
      _
    // Predicated region
    $region46: #{tpu_custom_call.1} parent=1 // pred_check
      _
    $region47: #{tpu_custom_call.1} parent=1 // pred_check_branch
      %1391 = sbr.rel (0) target = $region49
    $region48: #{tpu_custom_call.1} parent=1 // pred_region
      %s1393 = ssub.s32 256, 256
      %1394 = vsyncadd [#allocation12], %s1393
      %s1395 = sshll.u32 [#allocation11], 4
      %s1396 = int_to_ptr.vmem [resolvable:$true] %s1395
      %1401 = dma.vmem_to_hbm [thread:$0]  %s1396, 256, %s7, [#allocation12], 128, 128, 8
    $region49: #{tpu_custom_call.1} parent=1 // pred_fallthru
      _
    // Predicated region
    $region50: #{tpu_custom_call.1} parent=1 // pred_check
      _
    $region51: #{tpu_custom_call.1} parent=1 // pred_check_branch
      %1403 = sbr.rel (0) target = $region53
    $region52: #{tpu_custom_call.1} parent=1 // pred_region
      %1404 = dma.done [#allocation4], 256
    $region53: #{tpu_custom_call.1} parent=1 // pred_fallthru
      _
    // Predicated region
    $region54: #{tpu_custom_call.1} parent=1 // pred_check
      _
    $region55: #{tpu_custom_call.1} parent=1 // pred_check_branch
      %1406 = sbr.rel (0) target = $region57
    $region56: #{tpu_custom_call.1} parent=1 // pred_region
      %1407 = dma.done [#allocation12], 256
    $region57: #{tpu_custom_call.1} parent=1 // pred_fallthru
      _
    %1408 = vsyncpa [#allocation3], 1
    %1409 = vsyncpa [#allocation6], 1
    %1410 = vsyncpa [#allocation9], 1
    %1411 = vsyncpa [#allocation4], 1
    %1412 = vsyncpa [#allocation12], 1

</llo_original>
